<compile_context>
chip_gen: v5e
topology: v5e:2x2
jax: 0.10.0
libtpu: 0.0.40
codegen_flags: <defaults>
</compile_context>

<pallas_src>
import math

import jax
import jax.numpy as jnp
from jax.experimental import pallas as pl
from jax.experimental.pallas import tpu as pltpu

NEG_SLOPE = 0.01   # nn.LeakyReLU default negative_slope
LANE = 128
SUBLANE = 8
TN_CAP = 2048      # max lane-tile width for the conv matmuls (VMEM-safe everywhere)


def _round_up(x, m):
    return (x + m - 1) // m * m


def _pick_lane_tile(m_elems, cap=TN_CAP):
    """Pad M to a multiple of 128 and pick the largest 128-multiple tile <= cap dividing it."""
    mp = _round_up(m_elems, LANE)
    units = mp // LANE
    cap_units = max(1, cap // LANE)
    best = max(d for d in range(1, cap_units + 1) if units % d == 0)
    return best * LANE, mp


# ------------------------------ Pallas kernels -------------------------------
def _conv_mm_kernel(w_ref, cols_ref, b_ref, o_ref):
    """Lane-dense conv matmul: o = leaky_relu(w^T @ cols^T + b).

    w_ref:   (Cp, K)   (Cout padded to 8 sublanes)
    cols_ref:(K, tn)   (spatial positions on lanes)
    b_ref:   (Cp, 1)
    o_ref:   (Cp, tn)
    """
    acc = jnp.dot(w_ref[...], cols_ref[...], preferred_element_type=jnp.float32)
    acc = acc + b_ref[...]
    o_ref[...] = jnp.where(acc >= 0, acc, NEG_SLOPE * acc)


def _linear_tail_kernel(x_ref, w1_ref, b1_ref, w2_ref, b2_ref, o_ref):
    """Fused linear1 + LeakyReLU + linear2 (single grid step, everything in VMEM)."""
    h = jnp.dot(x_ref[...], w1_ref[...], preferred_element_type=jnp.float32)
    h = h + b1_ref[...]
    h = jnp.where(h >= 0, h, NEG_SLOPE * h)
    y = jnp.dot(h, w2_ref[...], preferred_element_type=jnp.float32)
    o_ref[...] = y + b2_ref[...]


# ------------------------------- conv wrapper --------------------------------
def conv2d_lane_dense(a_cm, w_oihw, b, stride):
    """'VALID' conv (PyTorch Conv2d, no padding) with fused LeakyReLU.

    a_cm: channel-major activation (Cin, B, H, W).  Returns (Cout, B, Ho, Wo).
    """
    Cout, Cin, kh, kw = w_oihw.shape
    _, B, H, W = a_cm.shape
    Ho = (H - kh) // stride + 1
    Wo = (W - kw) // stride + 1
    M = B * Ho * Wo
    K = kh * kw * Cin

    # Transposed im2col: rows indexed by (dh, dw, ci), columns by (b, ho, wo).
    rows = []
    for dh in range(kh):
        for dw in range(kw):
            rows.append(
                a_cm[:, :, dh:dh + stride * Ho:stride, dw:dw + stride * Wo:stride]
                .reshape(Cin, M))
    cols_t = jnp.concatenate(rows, axis=0)                       # (K, M)

    tn, Mp = _pick_lane_tile(M)
    if Mp != M:
        cols_t = jnp.pad(cols_t, ((0, 0), (0, Mp - M)))

    Cp = SUBLANE
    # (Cout, Cin, kh, kw) -> (Cout, kh, kw, Cin) -> (Cout, K); pad Cout -> 8 sublanes.
    w_t = jnp.transpose(w_oihw, (0, 2, 3, 1)).reshape(Cout, K)
    w_t = jnp.pad(w_t, ((0, Cp - Cout), (0, 0)))
    b_col = jnp.pad(b, (0, Cp - Cout)).reshape(Cp, 1)

    out_t = pl.pallas_call(
        _conv_mm_kernel,
        out_shape=jax.ShapeDtypeStruct((Cp, Mp), jnp.float32),
        grid_spec=pltpu.PrefetchScalarGridSpec(
            num_scalar_prefetch=0,
            grid=(Mp // tn,),
            in_specs=[
                pl.BlockSpec((Cp, K), lambda j: (0, 0)),   # weights: resident
                pl.BlockSpec((K, tn), lambda j: (0, j)),   # cols tile (full K)
                pl.BlockSpec((Cp, 1), lambda j: (0, 0)),   # bias: resident
            ],
            out_specs=pl.BlockSpec((Cp, tn), lambda j: (0, j)),
        ),
        compiler_params=pltpu.CompilerParams(
            dimension_semantics=("parallel",)),
    )(w_t, cols_t, b_col)

    return out_t[:Cout, :M].reshape(Cout, B, Ho, Wo)


# ------------------------------ linear wrapper --------------------------------
def linear_tail(x, w1, b1, w2, b2):
    """Fused x -> leaky(x@w1+b1) @ w2 + b2 in one single-step pallas_call."""
    B, K1 = x.shape
    _, N1 = w1.shape
    _, N2 = w2.shape
    Bp = _round_up(B, SUBLANE)
    N1p = _round_up(N1, LANE)
    N2p = _round_up(N2, LANE)

    xp = jnp.pad(x, ((0, Bp - B), (0, 0)))
    w1p = jnp.pad(w1, ((0, 0), (0, N1p - N1)))
    b1p = jnp.pad(b1, (0, N1p - N1)).reshape(1, N1p)
    w2p = jnp.pad(w2, ((0, N1p - N1), (0, N2p - N2)))
    b2p = jnp.pad(b2, (0, N2p - N2)).reshape(1, N2p)

    out = pl.pallas_call(
        _linear_tail_kernel,
        out_shape=jax.ShapeDtypeStruct((Bp, N2p), jnp.float32),
        grid_spec=pltpu.PrefetchScalarGridSpec(
            num_scalar_prefetch=0,
            grid=(1,),
            in_specs=[
                pl.BlockSpec((Bp, K1), lambda i: (0, 0)),
                pl.BlockSpec((K1, N1p), lambda i: (0, 0)),
                pl.BlockSpec((1, N1p), lambda i: (0, 0)),
                pl.BlockSpec((N1p, N2p), lambda i: (0, 0)),
                pl.BlockSpec((1, N2p), lambda i: (0, 0)),
            ],
            out_specs=pl.BlockSpec((Bp, N2p), lambda i: (0, 0)),
        ),
    )(xp, w1p, b1p, w2p, b2p)
    return out[:B, :N2]


# --------------------------------- forward ------------------------------------
def convnet_forward(states, p):
    a = states[None, :, :, :]                                 # (1, B, H, W) channel-major
    a = conv2d_lane_dense(a, p["w1"], p["b1"], stride=1)      # (5, B, 92, 146)
    a = conv2d_lane_dense(a, p["w2"], p["b2"], stride=2)      # (3, B, 44, 71)
    a = conv2d_lane_dense(a, p["w3"], p["b3"], stride=3)      # (3, B, 14, 23)
    C, B, Ho, Wo = a.shape
    x = jnp.transpose(a, (1, 0, 2, 3)).reshape(B, C * Ho * Wo)   # NCHW flatten -> (B, 966)
    y = linear_tail(x, p["lw1"], p["lb1"], p["lw2"], p["lb2"])   # (B, 9)
    return y.reshape(-1, 3, 3)


# ----------------------------- pure-JAX reference -----------------------------
def convnet_reference(states, p):
    leaky = lambda v: jnp.where(v >= 0, v, NEG_SLOPE * v)
    x = states[:, None, :, :]
    for w, b, s in ((p["w1"], p["b1"], 1), (p["w2"], p["b2"], 2), (p["w3"], p["b3"], 3)):
        x = jax.lax.conv_general_dilated(
            x, w, window_strides=(s, s), padding="VALID",
            dimension_numbers=("NCHW", "OIHW", "NCHW"),
            precision=jax.lax.Precision.HIGHEST,
        )
        x = leaky(x + b[None, :, None, None])
    x = x.reshape(x.shape[0], -1)
    x = leaky(jnp.dot(x, p["lw1"], precision=jax.lax.Precision.HIGHEST) + p["lb1"])
    x = jnp.dot(x, p["lw2"], precision=jax.lax.Precision.HIGHEST) + p["lb2"]
    return x.reshape(-1, 3, 3)


# --------------------------------- params -------------------------------------
def init_params(key):
    keys = jax.random.split(key, 10)

    def uni(k, shape, fan_in):
        bound = 1.0 / math.sqrt(fan_in)
        return jax.random.uniform(k, shape, jnp.float32, -bound, bound)

    return {
        # Conv weights kept in PyTorch OIHW layout; biases 1-D.
        "w1": uni(keys[0], (5, 1, 5, 5), 1 * 25),
        "b1": uni(keys[1], (5,), 1 * 25),
        "w2": uni(keys[2], (3, 5, 5, 5), 5 * 25),
        "b2": uni(keys[3], (3,), 5 * 25),
        "w3": uni(keys[4], (3, 3, 5, 5), 3 * 25),
        "b3": uni(keys[5], (3,), 3 * 25),
        # Linear weights stored pre-transposed as (in, out).
        "lw1": uni(keys[6], (966, 100), 966),
        "lb1": uni(keys[7], (100,), 966),
        "lw2": uni(keys[8], (100, 9), 100),
        "lb2": uni(keys[9], (9,), 100),
    }


if __name__ == "__main__":
    key = jax.random.PRNGKey(0)
    pkey, xkey = jax.random.split(key)
    params = init_params(pkey)

    # (B, H, W) = (2, 96, 150): consistent with linear1 in_features == 966.
    states = jax.random.normal(xkey, (2, 96, 150), jnp.float32)

    fwd = jax.jit(convnet_forward)
    out = jax.block_until_ready(fwd(states, params))
    assert out.shape == (2, 3, 3), out.shape

    ref = jax.block_until_ready(jax.jit(convnet_reference)(states, params))
    max_err = float(jnp.max(jnp.abs(out - ref)))
    assert jnp.allclose(out, ref, rtol=2e-3, atol=2e-3), max_err

    print("KERNEL_OK")
</pallas_src>

<mosaic_0001>
module attributes {stable_mosaic.version = 11 : i64} {
  func.func @_conv_mm_kernel(%arg0: i32, %arg1: memref<8x25xf32, #tpu.memory_space<vmem>>, %arg2: memref<25x1920xf32, #tpu.memory_space<vmem>>, %arg3: memref<8x1xf32, #tpu.memory_space<vmem>>, %arg4: memref<8x1920xf32, #tpu.memory_space<vmem>>) attributes {dimension_semantics = [#tpu.dimension_semantics<parallel>], iteration_bounds = array<i64: 14>, scalar_prefetch = 0 : i64, scratch_operands = 0 : i64, tpu.core_type = #tpu.core_type<tc>, window_params = [{pipeline_mode = #tpu.pipeline_mode<synchronous>, transform_indices = @transform_0, window_bounds = array<i64: 8, 25>}, {transform_indices = @transform_1, window_bounds = array<i64: 25, 1920>}, {pipeline_mode = #tpu.pipeline_mode<synchronous>, transform_indices = @transform_2, window_bounds = array<i64: 8, 1>}, {transform_indices = @transform_3, window_bounds = array<i64: 8, 1920>}]} {
    %c0 = arith.constant 0 : index
    %c0_0 = arith.constant 0 : index
    %0 = vector.load %arg1[%c0, %c0_0] : memref<8x25xf32, #tpu.memory_space<vmem>>, vector<8x25xf32>
    %c0_1 = arith.constant 0 : index
    %c0_2 = arith.constant 0 : index
    %1 = vector.load %arg2[%c0_1, %c0_2] : memref<25x1920xf32, #tpu.memory_space<vmem>>, vector<25x1920xf32>
    %cst = arith.constant dense<0.000000e+00> : vector<8x1920xf32>
    %2 = tpu.matmul %0, %1, %cst {dimension_numbers = #tpu.dot_dimension_numbers<[1], [0], [0], [1], [0, 0, 1, 1], [], []>} : vector<8x25xf32>, vector<25x1920xf32>, vector<8x1920xf32> -> vector<8x1920xf32>
    %c0_3 = arith.constant 0 : index
    %c0_4 = arith.constant 0 : index
    %3 = vector.load %arg3[%c0_3, %c0_4] : memref<8x1xf32, #tpu.memory_space<vmem>>, vector<8x1xf32>
    %4 = vector.broadcast %3 : vector<8x1xf32> to vector<8x1920xf32>
    %5 = arith.addf %2, %4 : vector<8x1920xf32>
    %cst_5 = arith.constant 0.000000e+00 : f32
    %6 = vector.broadcast %cst_5 : f32 to vector<8x1920xf32>
    %7 = arith.cmpf oge, %5, %6 : vector<8x1920xf32>
    %cst_6 = arith.constant 0.00999999977 : f32
    %8 = vector.broadcast %cst_6 : f32 to vector<8x1920xf32>
    %9 = arith.mulf %8, %5 : vector<8x1920xf32>
    %10 = arith.select %7, %5, %9 : vector<8x1920xi1>, vector<8x1920xf32>
    %c0_7 = arith.constant 0 : index
    %c0_8 = arith.constant 0 : index
    %11 = vector.load %arg4[%c0_7, %c0_8] : memref<8x1920xf32, #tpu.memory_space<vmem>>, vector<8x1920xf32>
    tpu.vector_store %arg4[%c0_7, %c0_8], %10 {strides = array<i32>} : memref<8x1920xf32, #tpu.memory_space<vmem>>, vector<8x1920xf32>,
    return
  }
  func.func @transform_0(%arg0: i32) -> (i32, i32) {
    %c0_i32 = arith.constant 0 : i32
    %c0_i32_0 = arith.constant 0 : i32
    %c0_i32_1 = arith.constant 0 : i32
    return %c0_i32, %c0_i32_0 : i32, i32
  }
  func.func @transform_1(%arg0: i32) -> (i32, i32) {
    %c0_i32 = arith.constant 0 : i32
    %c0_i32_0 = arith.constant 0 : i32
    return %c0_i32, %arg0 : i32, i32
  }
  func.func @transform_2(%arg0: i32) -> (i32, i32) {
    %c0_i32 = arith.constant 0 : i32
    %c0_i32_0 = arith.constant 0 : i32
    %c0_i32_1 = arith.constant 0 : i32
    return %c0_i32, %c0_i32_0 : i32, i32
  }
  func.func @transform_3(%arg0: i32) -> (i32, i32) {
    %c0_i32 = arith.constant 0 : i32
    %c0_i32_0 = arith.constant 0 : i32
    return %c0_i32, %arg0 : i32, i32
  }
}

module attributes {stable_mosaic.version = 11 : i64} {
  func.func @_conv_mm_kernel(%arg0: i32, %arg1: memref<8x125xf32, #tpu.memory_space<vmem>>, %arg2: memref<125x896xf32, #tpu.memory_space<vmem>>, %arg3: memref<8x1xf32, #tpu.memory_space<vmem>>, %arg4: memref<8x896xf32, #tpu.memory_space<vmem>>) attributes {dimension_semantics = [#tpu.dimension_semantics<parallel>], iteration_bounds = array<i64: 7>, scalar_prefetch = 0 : i64, scratch_operands = 0 : i64, tpu.core_type = #tpu.core_type<tc>, window_params = [{pipeline_mode = #tpu.pipeline_mode<synchronous>, transform_indices = @transform_0, window_bounds = array<i64: 8, 125>}, {transform_indices = @transform_1, window_bounds = array<i64: 125, 896>}, {pipeline_mode = #tpu.pipeline_mode<synchronous>, transform_indices = @transform_2, window_bounds = array<i64: 8, 1>}, {transform_indices = @transform_3, window_bounds = array<i64: 8, 896>}]} {
    %c0 = arith.constant 0 : index
    %c0_0 = arith.constant 0 : index
    %0 = vector.load %arg1[%c0, %c0_0] : memref<8x125xf32, #tpu.memory_space<vmem>>, vector<8x125xf32>
    %c0_1 = arith.constant 0 : index
    %c0_2 = arith.constant 0 : index
    %1 = vector.load %arg2[%c0_1, %c0_2] : memref<125x896xf32, #tpu.memory_space<vmem>>, vector<125x896xf32>
    %cst = arith.constant dense<0.000000e+00> : vector<8x896xf32>
    %2 = tpu.matmul %0, %1, %cst {dimension_numbers = #tpu.dot_dimension_numbers<[1], [0], [0], [1], [0, 0, 1, 1], [], []>} : vector<8x125xf32>, vector<125x896xf32>, vector<8x896xf32> -> vector<8x896xf32>
    %c0_3 = arith.constant 0 : index
    %c0_4 = arith.constant 0 : index
    %3 = vector.load %arg3[%c0_3, %c0_4] : memref<8x1xf32, #tpu.memory_space<vmem>>, vector<8x1xf32>
    %4 = vector.broadcast %3 : vector<8x1xf32> to vector<8x896xf32>
    %5 = arith.addf %2, %4 : vector<8x896xf32>
    %cst_5 = arith.constant 0.000000e+00 : f32
    %6 = vector.broadcast %cst_5 : f32 to vector<8x896xf32>
    %7 = arith.cmpf oge, %5, %6 : vector<8x896xf32>
    %cst_6 = arith.constant 0.00999999977 : f32
    %8 = vector.broadcast %cst_6 : f32 to vector<8x896xf32>
    %9 = arith.mulf %8, %5 : vector<8x896xf32>
    %10 = arith.select %7, %5, %9 : vector<8x896xi1>, vector<8x896xf32>
    %c0_7 = arith.constant 0 : index
    %c0_8 = arith.constant 0 : index
    %11 = vector.load %arg4[%c0_7, %c0_8] : memref<8x896xf32, #tpu.memory_space<vmem>>, vector<8x896xf32>
    tpu.vector_store %arg4[%c0_7, %c0_8], %10 {strides = array<i32>} : memref<8x896xf32, #tpu.memory_space<vmem>>, vector<8x896xf32>,
    return
  }
  func.func @transform_0(%arg0: i32) -> (i32, i32) {
    %c0_i32 = arith.constant 0 : i32
    %c0_i32_0 = arith.constant 0 : i32
    %c0_i32_1 = arith.constant 0 : i32
    return %c0_i32, %c0_i32_0 : i32, i32
  }
  func.func @transform_1(%arg0: i32) -> (i32, i32) {
    %c0_i32 = arith.constant 0 : i32
    %c0_i32_0 = arith.constant 0 : i32
    return %c0_i32, %arg0 : i32, i32
  }
  func.func @transform_2(%arg0: i32) -> (i32, i32) {
    %c0_i32 = arith.constant 0 : i32
    %c0_i32_0 = arith.constant 0 : i32
    %c0_i32_1 = arith.constant 0 : i32
    return %c0_i32, %c0_i32_0 : i32, i32
  }
  func.func @transform_3(%arg0: i32) -> (i32, i32) {
    %c0_i32 = arith.constant 0 : i32
    %c0_i32_0 = arith.constant 0 : i32
    return %c0_i32, %arg0 : i32, i32
  }
}

module attributes {stable_mosaic.version = 11 : i64} {
  func.func @_conv_mm_kernel(%arg0: i32, %arg1: memref<8x75xf32, #tpu.memory_space<vmem>>, %arg2: memref<75x768xf32, #tpu.memory_space<vmem>>, %arg3: memref<8x1xf32, #tpu.memory_space<vmem>>, %arg4: memref<8x768xf32, #tpu.memory_space<vmem>>) attributes {dimension_semantics = [#tpu.dimension_semantics<parallel>], iteration_bounds = array<i64: 1>, scalar_prefetch = 0 : i64, scratch_operands = 0 : i64, tpu.core_type = #tpu.core_type<tc>, window_params = [{pipeline_mode = #tpu.pipeline_mode<synchronous>, transform_indices = @transform_0, window_bounds = array<i64: 8, 75>}, {transform_indices = @transform_1, window_bounds = array<i64: 75, 768>}, {pipeline_mode = #tpu.pipeline_mode<synchronous>, transform_indices = @transform_2, window_bounds = array<i64: 8, 1>}, {transform_indices = @transform_3, window_bounds = array<i64: 8, 768>}]} {
    %c0 = arith.constant 0 : index
    %c0_0 = arith.constant 0 : index
    %0 = vector.load %arg1[%c0, %c0_0] : memref<8x75xf32, #tpu.memory_space<vmem>>, vector<8x75xf32>
    %c0_1 = arith.constant 0 : index
    %c0_2 = arith.constant 0 : index
    %1 = vector.load %arg2[%c0_1, %c0_2] : memref<75x768xf32, #tpu.memory_space<vmem>>, vector<75x768xf32>
    %cst = arith.constant dense<0.000000e+00> : vector<8x768xf32>
    %2 = tpu.matmul %0, %1, %cst {dimension_numbers = #tpu.dot_dimension_numbers<[1], [0], [0], [1], [0, 0, 1, 1], [], []>} : vector<8x75xf32>, vector<75x768xf32>, vector<8x768xf32> -> vector<8x768xf32>
    %c0_3 = arith.constant 0 : index
    %c0_4 = arith.constant 0 : index
    %3 = vector.load %arg3[%c0_3, %c0_4] : memref<8x1xf32, #tpu.memory_space<vmem>>, vector<8x1xf32>
    %4 = vector.broadcast %3 : vector<8x1xf32> to vector<8x768xf32>
    %5 = arith.addf %2, %4 : vector<8x768xf32>
    %cst_5 = arith.constant 0.000000e+00 : f32
    %6 = vector.broadcast %cst_5 : f32 to vector<8x768xf32>
    %7 = arith.cmpf oge, %5, %6 : vector<8x768xf32>
    %cst_6 = arith.constant 0.00999999977 : f32
    %8 = vector.broadcast %cst_6 : f32 to vector<8x768xf32>
    %9 = arith.mulf %8, %5 : vector<8x768xf32>
    %10 = arith.select %7, %5, %9 : vector<8x768xi1>, vector<8x768xf32>
    %c0_7 = arith.constant 0 : index
    %c0_8 = arith.constant 0 : index
    %11 = vector.load %arg4[%c0_7, %c0_8] : memref<8x768xf32, #tpu.memory_space<vmem>>, vector<8x768xf32>
    tpu.vector_store %arg4[%c0_7, %c0_8], %10 {strides = array<i32>} : memref<8x768xf32, #tpu.memory_space<vmem>>, vector<8x768xf32>,
    return
  }
  func.func @transform_0(%arg0: i32) -> (i32, i32) {
    %c0_i32 = arith.constant 0 : i32
    %c0_i32_0 = arith.constant 0 : i32
    %c0_i32_1 = arith.constant 0 : i32
    return %c0_i32, %c0_i32_0 : i32, i32
  }
  func.func @transform_1(%arg0: i32) -> (i32, i32) {
    %c0_i32 = arith.constant 0 : i32
    %c0_i32_0 = arith.constant 0 : i32
    return %c0_i32, %arg0 : i32, i32
  }
  func.func @transform_2(%arg0: i32) -> (i32, i32) {
    %c0_i32 = arith.constant 0 : i32
    %c0_i32_0 = arith.constant 0 : i32
    %c0_i32_1 = arith.constant 0 : i32
    return %c0_i32, %c0_i32_0 : i32, i32
  }
  func.func @transform_3(%arg0: i32) -> (i32, i32) {
    %c0_i32 = arith.constant 0 : i32
    %c0_i32_0 = arith.constant 0 : i32
    return %c0_i32, %arg0 : i32, i32
  }
}

module attributes {stable_mosaic.version = 11 : i64} {
  func.func @_linear_tail_kernel(%arg0: i32, %arg1: memref<8x966xf32, #tpu.memory_space<vmem>>, %arg2: memref<966x128xf32, #tpu.memory_space<vmem>>, %arg3: memref<1x128xf32, #tpu.memory_space<vmem>>, %arg4: memref<128x128xf32, #tpu.memory_space<vmem>>, %arg5: memref<1x128xf32, #tpu.memory_space<vmem>>, %arg6: memref<8x128xf32, #tpu.memory_space<vmem>>) attributes {dimension_semantics = [#tpu.dimension_semantics<arbitrary>], iteration_bounds = array<i64: 1>, scalar_prefetch = 0 : i64, scratch_operands = 0 : i64, tpu.core_type = #tpu.core_type<tc>, window_params = [{pipeline_mode = #tpu.pipeline_mode<synchronous>, transform_indices = @transform_0, window_bounds = array<i64: 8, 966>}, {pipeline_mode = #tpu.pipeline_mode<synchronous>, transform_indices = @transform_1, window_bounds = array<i64: 966, 128>}, {pipeline_mode = #tpu.pipeline_mode<synchronous>, transform_indices = @transform_2, window_bounds = array<i64: 1, 128>}, {pipeline_mode = #tpu.pipeline_mode<synchronous>, transform_indices = @transform_3, window_bounds = array<i64: 128, 128>}, {pipeline_mode = #tpu.pipeline_mode<synchronous>, transform_indices = @transform_4, window_bounds = array<i64: 1, 128>}, {pipeline_mode = #tpu.pipeline_mode<synchronous>, transform_indices = @transform_5, window_bounds = array<i64: 8, 128>}]} {
    %c0 = arith.constant 0 : index
    %c0_0 = arith.constant 0 : index
    %0 = vector.load %arg1[%c0, %c0_0] : memref<8x966xf32, #tpu.memory_space<vmem>>, vector<8x966xf32>
    %c0_1 = arith.constant 0 : index
    %c0_2 = arith.constant 0 : index
    %1 = vector.load %arg2[%c0_1, %c0_2] : memref<966x128xf32, #tpu.memory_space<vmem>>, vector<966x128xf32>
    %cst = arith.constant dense<0.000000e+00> : vector<8x128xf32>
    %2 = tpu.matmul %0, %1, %cst {dimension_numbers = #tpu.dot_dimension_numbers<[1], [0], [0], [1], [0, 0, 1, 1], [], []>} : vector<8x966xf32>, vector<966x128xf32>, vector<8x128xf32> -> vector<8x128xf32>
    %c0_3 = arith.constant 0 : index
    %c0_4 = arith.constant 0 : index
    %3 = vector.load %arg3[%c0_3, %c0_4] : memref<1x128xf32, #tpu.memory_space<vmem>>, vector<1x128xf32>
    %4 = vector.broadcast %3 : vector<1x128xf32> to vector<8x128xf32>
    %5 = arith.addf %2, %4 : vector<8x128xf32>
    %cst_5 = arith.constant 0.000000e+00 : f32
    %6 = vector.broadcast %cst_5 : f32 to vector<8x128xf32>
    %7 = arith.cmpf oge, %5, %6 : vector<8x128xf32>
    %cst_6 = arith.constant 0.00999999977 : f32
    %8 = vector.broadcast %cst_6 : f32 to vector<8x128xf32>
    %9 = arith.mulf %8, %5 : vector<8x128xf32>
    %10 = arith.select %7, %5, %9 : vector<8x128xi1>, vector<8x128xf32>
    %c0_7 = arith.constant 0 : index
    %c0_8 = arith.constant 0 : index
    %11 = vector.load %arg4[%c0_7, %c0_8] : memref<128x128xf32, #tpu.memory_space<vmem>>, vector<128x128xf32>
    %cst_9 = arith.constant dense<0.000000e+00> : vector<8x128xf32>
    %12 = tpu.matmul %10, %11, %cst_9 {dimension_numbers = #tpu.dot_dimension_numbers<[1], [0], [0], [1], [0, 0, 1, 1], [], []>} : vector<8x128xf32>, vector<128x128xf32>, vector<8x128xf32> -> vector<8x128xf32>
    %c0_10 = arith.constant 0 : index
    %c0_11 = arith.constant 0 : index
    %13 = vector.load %arg5[%c0_10, %c0_11] : memref<1x128xf32, #tpu.memory_space<vmem>>, vector<1x128xf32>
    %14 = vector.broadcast %13 : vector<1x128xf32> to vector<8x128xf32>
    %15 = arith.addf %12, %14 : vector<8x128xf32>
    %c0_12 = arith.constant 0 : index
    %c0_13 = arith.constant 0 : index
    %16 = vector.load %arg6[%c0_12, %c0_13] : memref<8x128xf32, #tpu.memory_space<vmem>>, vector<8x128xf32>
    tpu.vector_store %arg6[%c0_12, %c0_13], %15 {strides = array<i32>} : memref<8x128xf32, #tpu.memory_space<vmem>>, vector<8x128xf32>,
    return
  }
  func.func @transform_0(%arg0: i32) -> (i32, i32) {
    %c0_i32 = arith.constant 0 : i32
    %c0_i32_0 = arith.constant 0 : i32
    %c0_i32_1 = arith.constant 0 : i32
    return %c0_i32, %c0_i32_0 : i32, i32
  }
  func.func @transform_1(%arg0: i32) -> (i32, i32) {
    %c0_i32 = arith.constant 0 : i32
    %c0_i32_0 = arith.constant 0 : i32
    %c0_i32_1 = arith.constant 0 : i32
    return %c0_i32, %c0_i32_0 : i32, i32
  }
  func.func @transform_2(%arg0: i32) -> (i32, i32) {
    %c0_i32 = arith.constant 0 : i32
    %c0_i32_0 = arith.constant 0 : i32
    %c0_i32_1 = arith.constant 0 : i32
    return %c0_i32, %c0_i32_0 : i32, i32
  }
  func.func @transform_3(%arg0: i32) -> (i32, i32) {
    %c0_i32 = arith.constant 0 : i32
    %c0_i32_0 = arith.constant 0 : i32
    %c0_i32_1 = arith.constant 0 : i32
    return %c0_i32, %c0_i32_0 : i32, i32
  }
  func.func @transform_4(%arg0: i32) -> (i32, i32) {
    %c0_i32 = arith.constant 0 : i32
    %c0_i32_0 = arith.constant 0 : i32
    %c0_i32_1 = arith.constant 0 : i32
    return %c0_i32, %c0_i32_0 : i32, i32
  }
  func.func @transform_5(%arg0: i32) -> (i32, i32) {
    %c0_i32 = arith.constant 0 : i32
    %c0_i32_0 = arith.constant 0 : i32
    %c0_i32_1 = arith.constant 0 : i32
    return %c0_i32, %c0_i32_0 : i32, i32
  }
}

</mosaic_0001>

<llo_original>
// kernel: convnet_forward.4
$region0: #{convnet_forward.4}
  #allocation0 [shape = 'u32[]', space=smem, size = 0x4, offset = 0x4, fixed_abs, tag = 'smem constant byte address 0x4 - core index']
  #allocation1 [shape = 'u32[72,128]{1,0:T(1,128)}', space=vmem, size = 0x9000, scoped, tag = 'internal scratch']
  %s0 = inlined_call_operand.vmem [shape: f32[8,25], index: 0, kind: input, shape index: {}]
  %s1 = inlined_call_operand.vmem [shape: f32[25,26880], index: 1, kind: input, shape index: {}]
  %s2 = inlined_call_operand.vmem [shape: f32[8,1], index: 2, kind: input, shape index: {}]
  %s3 = inlined_call_operand.vmem [shape: f32[8,26880], index: 3, kind: output, shape index: {}]
  %s4 = sld [smem:[#allocation0]]
  $region68: #{convnet_forward.4} parent=0
    _
  %s6 = ssub.s32 1, %s4
  %s7 = scalar_select 0, %s6, %s4
  $region1: #{convnet_forward.4} parent=0
    #allocation2 [shape = 'u8[491520]{0}', space=vmem, size = 0x78000, scoped, tag = 'input window, operand 1']
    loop: start=0, step=1, limit=16
    $region2: #{convnet_forward.4} parent=1 // loop_pre_header
      _
    $region3: #{convnet_forward.4} parent=1 // loop_header
      %s9 = sphi 0, %s13
      %p10 = scmp.ge.s32.totalorder %s9, 16
      %s17 = sphi 0, %s17
      %s19 = sphi 0, %s17
      %s20 = sphi 0, %s19
      %s34 = sphi 0, %s20
      %s40 = sphi 0, %s42
      %s43 = sphi 0, %s40
      %s44 = sphi 0, %s43
      %s60 = sphi 0, %s44
      %s64 = sphi 0, %s64
      %s66 = sphi 0, %s64
      %s67 = sphi 0, %s66
      %s81 = sphi 0, %s67
      %s87 = sphi 0, %s89
      %s90 = sphi 0, %s87
      %s91 = sphi 0, %s90
      %s107 = sphi 0, %s91
    $region4: #{convnet_forward.4} parent=1 // loop_header_branch
      %12 = sbr.rel (%p10) target = $region8
    $region5: #{convnet_forward.4} parent=1 // loop_body
      %s14 = ssub.s32 %s9, 1
      %s15 = ssub.s32 %s9, 2
      %s16 = sadd.s32 %s9, 1
      %s18 = sadd.s32 %s17, 1
      %p21 = scmp.eq.s32.totalorder %s9, 13
      %p22 = scmp.ne.s32.totalorder %s17, %s19
      %p23 = scmp.eq.s32.totalorder %s9, 0
      %p24 = por %p22, %p23
      %p25 = scmp.ne.s32.totalorder %s17, %s19
      %p26 = scmp.eq.s32.totalorder %s14, 13
      %p27 = por %p25, %p26
      %p28 = scmp.ne.s32.totalorder %s19, %s20
      %p29 = scmp.eq.s32.totalorder %s14, 0
      %p30 = por %p28, %p29
      %p31 = scmp.ne.s32.totalorder %s19, %s20
      %p32 = scmp.eq.s32.totalorder %s15, 13
      %p33 = por %p31, %p32
      %p35 = scmp.ne.s32.totalorder %s20, %s34
      %p36 = scmp.eq.s32.totalorder %s15, 0
      %p37 = por %p35, %p36
      %s38 = ssub.s32 %s9, %s16
      %p39 = scmp.eq.s32.totalorder %s38, 0
      %s41 = sadd.s32 %s40, 1
      %s42 = scalar_select %p39, %s40, %s41
      %p45 = pneg %p39
      %p46 = scmp.eq.s32.totalorder %s9, 13
      %p47 = por %p45, %p46
      %p48 = scmp.ne.s32.totalorder %s40, %s43
      %p49 = scmp.eq.s32.totalorder %s9, 0
      %p50 = por %p48, %p49
      %p51 = scmp.ne.s32.totalorder %s40, %s43
      %p52 = scmp.eq.s32.totalorder %s14, 13
      %p53 = por %p51, %p52
      %p54 = scmp.ne.s32.totalorder %s43, %s44
      %p55 = scmp.eq.s32.totalorder %s14, 0
      %p56 = por %p54, %p55
      %p57 = scmp.ne.s32.totalorder %s43, %s44
      %p58 = scmp.eq.s32.totalorder %s15, 13
      %p59 = por %p57, %p58
      %p61 = scmp.ne.s32.totalorder %s44, %s60
      %p62 = scmp.eq.s32.totalorder %s15, 0
      %p63 = por %p61, %p62
      %s65 = sadd.s32 %s64, 1
      %p68 = scmp.eq.s32.totalorder %s9, 13
      %p69 = scmp.ne.s32.totalorder %s64, %s66
      %p70 = scmp.eq.s32.totalorder %s9, 0
      %p71 = por %p69, %p70
      %p72 = scmp.ne.s32.totalorder %s64, %s66
      %p73 = scmp.eq.s32.totalorder %s14, 13
      %p74 = por %p72, %p73
      %p75 = scmp.ne.s32.totalorder %s66, %s67
      %p76 = scmp.eq.s32.totalorder %s14, 0
      %p77 = por %p75, %p76
      %p78 = scmp.ne.s32.totalorder %s66, %s67
      %p79 = scmp.eq.s32.totalorder %s15, 13
      %p80 = por %p78, %p79
      %p82 = scmp.ne.s32.totalorder %s67, %s81
      %p83 = scmp.eq.s32.totalorder %s15, 0
      %p84 = por %p82, %p83
      %s85 = ssub.s32 %s9, %s16
      %p86 = scmp.eq.s32.totalorder %s85, 0
      %s88 = sadd.s32 %s87, 1
      %s89 = scalar_select %p86, %s87, %s88
      %p92 = pneg %p86
      %p93 = scmp.eq.s32.totalorder %s9, 13
      %p94 = por %p92, %p93
      %p95 = scmp.ne.s32.totalorder %s87, %s90
      %p96 = scmp.eq.s32.totalorder %s9, 0
      %p97 = por %p95, %p96
      %p98 = scmp.ne.s32.totalorder %s87, %s90
      %p99 = scmp.eq.s32.totalorder %s14, 13
      %p100 = por %p98, %p99
      %p101 = scmp.ne.s32.totalorder %s90, %s91
      %p102 = scmp.eq.s32.totalorder %s14, 0
      %p103 = por %p101, %p102
      %p104 = scmp.ne.s32.totalorder %s90, %s91
      %p105 = scmp.eq.s32.totalorder %s15, 13
      %p106 = por %p104, %p105
      %p108 = scmp.ne.s32.totalorder %s91, %s107
      %p109 = scmp.eq.s32.totalorder %s15, 0
      %p110 = por %p108, %p109
      %p111 = scmp.le.s32.totalorder 1, %s9
      %p112 = scmp.lt.s32.totalorder %s9, 15
      %p113 = pnand %p111, %p112
      %p114 = pneg %p113
      // Predicated region
      $region9: #{convnet_forward.4} parent=5 // pred_check
        _
      $region10: #{convnet_forward.4} parent=5 // pred_check_branch
        %116 = sbr.rel (%p113) target = $region12
      $region11: #{convnet_forward.4} parent=5 // pred_region
        %s117 = ssub.s32 %s9, 1
        // Predicated region
        $region13: #{convnet_forward.4} parent=11 // pred_check
          %p118 = pneg %p30
        $region14: #{convnet_forward.4} parent=11 // pred_check_branch
          %120 = sbr.rel (%p118) target = $region16
        $region15: #{convnet_forward.4} parent=11 // pred_region
          _
        $region16: #{convnet_forward.4} parent=11 // pred_fallthru
          _
        // Predicated region
        $region17: #{convnet_forward.4} parent=11 // pred_check
          %p121 = pneg %p77
        $region18: #{convnet_forward.4} parent=11 // pred_check_branch
          %123 = sbr.rel (%p121) target = $region20
        $region19: #{convnet_forward.4} parent=11 // pred_region
          _
        $region20: #{convnet_forward.4} parent=11 // pred_fallthru
          _
      $region12: #{convnet_forward.4} parent=5 // pred_fallthru
        _
      %p124 = scmp.lt.s32.totalorder %s9, 14
      // Predicated region
      $region21: #{convnet_forward.4} parent=5 // pred_check
        %p125 = pneg %p124
      $region22: #{convnet_forward.4} parent=5 // pred_check_branch
        %127 = sbr.rel (%p125) target = $region24
      $region23: #{convnet_forward.4} parent=5 // pred_region
        // Predicated region
        $region25: #{convnet_forward.4} parent=23 // pred_check
          %p128 = pneg %p50
        $region26: #{convnet_forward.4} parent=23 // pred_check_branch
          %130 = sbr.rel (%p128) target = $region28
        $region27: #{convnet_forward.4} parent=23 // pred_region
          %s131 = sand.u32 %s40, 1
          %s132 = sand.u32 %s40, 1
          %s133 = smul.addr %s132, 480
          %s134 = scalar_lea.vmem [#allocation2], %s133
          %s135 = smul.u32 15, %s9
          %s136 = smul.addr %s135, 8
          %s137 = scalar_lea.vmem %s1, %s136
          // Predicated region
          $region29: #{convnet_forward.4} parent=27 // pred_check
            _
          $region30: #{convnet_forward.4} parent=27 // pred_check_branch
            %139 = sbr.rel (0) target = $region32
          $region31: #{convnet_forward.4} parent=27 // pred_region
            // Predicated region
            $region33: #{convnet_forward.4} parent=31 // pred_check
              _
            $region34: #{convnet_forward.4} parent=31 // pred_check_branch
              %141 = sbr.rel (0) target = $region36
            $region35: #{convnet_forward.4} parent=31 // pred_region
              loop: start=0, step=1, limit=1
              $region37: #{convnet_forward.4} parent=35 // loop_pre_header
                _
              $region38: #{convnet_forward.4} parent=35 // loop_header
                %s143 = sphi 0, %s147
                %p144 = scmp.ge.s32.totalorder %s143, 1
                %s148 = sphi %s137, %s137
                %s149 = sphi %s134, %s134
              $region39: #{convnet_forward.4} parent=35 // loop_header_branch
                %146 = sbr.rel (%p144) target = $region43
              $region40: #{convnet_forward.4} parent=35 // loop_body
                %v150 = vld [vmem:[%s148] sm:$0xff]
                %151 = vst [vmem:[%s149] sm:$0xff] %v150
                %v152 = vld [vmem:[%s148 + $0x8] sm:$0xff]
                %153 = vst [vmem:[%s149 + $0x8] sm:$0xff] %v152
                %v154 = vld [vmem:[%s148 + $0x10] sm:$0xff]
                %155 = vst [vmem:[%s149 + $0x10] sm:$0xff] %v154
                %v156 = vld [vmem:[%s148 + $0x18] sm:$0xff]
                %157 = vst [vmem:[%s149 + $0x18] sm:$0xff] %v156
                %v158 = vld [vmem:[%s148 + $0x20] sm:$0xff]
                %159 = vst [vmem:[%s149 + $0x20] sm:$0xff] %v158
                %v160 = vld [vmem:[%s148 + $0x28] sm:$0xff]
                %161 = vst [vmem:[%s149 + $0x28] sm:$0xff] %v160
                %v162 = vld [vmem:[%s148 + $0x30] sm:$0xff]
                %163 = vst [vmem:[%s149 + $0x30] sm:$0xff] %v162
                %v164 = vld [vmem:[%s148 + $0x38] sm:$0xff]
                %165 = vst [vmem:[%s149 + $0x38] sm:$0xff] %v164
                %v166 = vld [vmem:[%s148 + $0x40] sm:$0xff]
                %167 = vst [vmem:[%s149 + $0x40] sm:$0xff] %v166
                %v168 = vld [vmem:[%s148 + $0x48] sm:$0xff]
                %169 = vst [vmem:[%s149 + $0x48] sm:$0xff] %v168
                %v170 = vld [vmem:[%s148 + $0x50] sm:$0xff]
                %171 = vst [vmem:[%s149 + $0x50] sm:$0xff] %v170
                %v172 = vld [vmem:[%s148 + $0x58] sm:$0xff]
                %173 = vst [vmem:[%s149 + $0x58] sm:$0xff] %v172
                %v174 = vld [vmem:[%s148 + $0x60] sm:$0xff]
                %175 = vst [vmem:[%s149 + $0x60] sm:$0xff] %v174
                %v176 = vld [vmem:[%s148 + $0x68] sm:$0xff]
                %177 = vst [vmem:[%s149 + $0x68] sm:$0xff] %v176
                %v178 = vld [vmem:[%s148 + $0x70] sm:$0xff]
                %179 = vst [vmem:[%s149 + $0x70] sm:$0xff] %v178
                %v180 = vld [vmem:[%s148 + $0x690] sm:$0xff]
                %181 = vst [vmem:[%s149 + $0x78] sm:$0xff] %v180
                %v182 = vld [vmem:[%s148 + $0x698] sm:$0xff]
                %183 = vst [vmem:[%s149 + $0x80] sm:$0xff] %v182
                %v184 = vld [vmem:[%s148 + $0x6a0] sm:$0xff]
                %185 = vst [vmem:[%s149 + $0x88] sm:$0xff] %v184
                %v186 = vld [vmem:[%s148 + $0x6a8] sm:$0xff]
                %187 = vst [vmem:[%s149 + $0x90] sm:$0xff] %v186
                %v188 = vld [vmem:[%s148 + $0x6b0] sm:$0xff]
                %189 = vst [vmem:[%s149 + $0x98] sm:$0xff] %v188
                %v190 = vld [vmem:[%s148 + $0x6b8] sm:$0xff]
                %191 = vst [vmem:[%s149 + $0xa0] sm:$0xff] %v190
                %v192 = vld [vmem:[%s148 + $0x6c0] sm:$0xff]
                %193 = vst [vmem:[%s149 + $0xa8] sm:$0xff] %v192
                %v194 = vld [vmem:[%s148 + $0x6c8] sm:$0xff]
                %195 = vst [vmem:[%s149 + $0xb0] sm:$0xff] %v194
                %v196 = vld [vmem:[%s148 + $0x6d0] sm:$0xff]
                %197 = vst [vmem:[%s149 + $0xb8] sm:$0xff] %v196
                %v198 = vld [vmem:[%s148 + $0x6d8] sm:$0xff]
                %199 = vst [vmem:[%s149 + $0xc0] sm:$0xff] %v198
                %v200 = vld [vmem:[%s148 + $0x6e0] sm:$0xff]
                %201 = vst [vmem:[%s149 + $0xc8] sm:$0xff] %v200
                %v202 = vld [vmem:[%s148 + $0x6e8] sm:$0xff]
                %203 = vst [vmem:[%s149 + $0xd0] sm:$0xff] %v202
                %v204 = vld [vmem:[%s148 + $0x6f0] sm:$0xff]
                %205 = vst [vmem:[%s149 + $0xd8] sm:$0xff] %v204
                %v206 = vld [vmem:[%s148 + $0x6f8] sm:$0xff]
                %207 = vst [vmem:[%s149 + $0xe0] sm:$0xff] %v206
                %v208 = vld [vmem:[%s148 + $0x700] sm:$0xff]
                %209 = vst [vmem:[%s149 + $0xe8] sm:$0xff] %v208
                %v210 = vld [vmem:[%s148 + $0xd20] sm:$0xff]
                %211 = vst [vmem:[%s149 + $0xf0] sm:$0xff] %v210
                %v212 = vld [vmem:[%s148 + $0xd28] sm:$0xff]
                %213 = vst [vmem:[%s149 + $0xf8] sm:$0xff] %v212
                %v214 = vld [vmem:[%s148 + $0xd30] sm:$0xff]
                %215 = vst [vmem:[%s149 + $0x100] sm:$0xff] %v214
                %v216 = vld [vmem:[%s148 + $0xd38] sm:$0xff]
                %217 = vst [vmem:[%s149 + $0x108] sm:$0xff] %v216
                %v218 = vld [vmem:[%s148 + $0xd40] sm:$0xff]
                %219 = vst [vmem:[%s149 + $0x110] sm:$0xff] %v218
                %v220 = vld [vmem:[%s148 + $0xd48] sm:$0xff]
                %221 = vst [vmem:[%s149 + $0x118] sm:$0xff] %v220
                %v222 = vld [vmem:[%s148 + $0xd50] sm:$0xff]
                %223 = vst [vmem:[%s149 + $0x120] sm:$0xff] %v222
                %v224 = vld [vmem:[%s148 + $0xd58] sm:$0xff]
                %225 = vst [vmem:[%s149 + $0x128] sm:$0xff] %v224
                %v226 = vld [vmem:[%s148 + $0xd60] sm:$0xff]
                %227 = vst [vmem:[%s149 + $0x130] sm:$0xff] %v226
                %v228 = vld [vmem:[%s148 + $0xd68] sm:$0xff]
                %229 = vst [vmem:[%s149 + $0x138] sm:$0xff] %v228
                %v230 = vld [vmem:[%s148 + $0xd70] sm:$0xff]
                %231 = vst [vmem:[%s149 + $0x140] sm:$0xff] %v230
                %v232 = vld [vmem:[%s148 + $0xd78] sm:$0xff]
                %233 = vst [vmem:[%s149 + $0x148] sm:$0xff] %v232
                %v234 = vld [vmem:[%s148 + $0xd80] sm:$0xff]
                %235 = vst [vmem:[%s149 + $0x150] sm:$0xff] %v234
                %v236 = vld [vmem:[%s148 + $0xd88] sm:$0xff]
                %237 = vst [vmem:[%s149 + $0x158] sm:$0xff] %v236
                %v238 = vld [vmem:[%s148 + $0xd90] sm:$0xff]
                %239 = vst [vmem:[%s149 + $0x160] sm:$0xff] %v238
                %v240 = vld [vmem:[%s148 + $0x13b0] sm:$0xff]
                %241 = vst [vmem:[%s149 + $0x168] sm:$0xff] %v240
                %v242 = vld [vmem:[%s148 + $0x13b8] sm:$0xff]
                %243 = vst [vmem:[%s149 + $0x170] sm:$0xff] %v242
                %v244 = vld [vmem:[%s148 + $0x13c0] sm:$0xff]
                %245 = vst [vmem:[%s149 + $0x178] sm:$0xff] %v244
                %v246 = vld [vmem:[%s148 + $0x13c8] sm:$0xff]
                %247 = vst [vmem:[%s149 + $0x180] sm:$0xff] %v246
                %v248 = vld [vmem:[%s148 + $0x13d0] sm:$0xff]
                %249 = vst [vmem:[%s149 + $0x188] sm:$0xff] %v248
                %v250 = vld [vmem:[%s148 + $0x13d8] sm:$0xff]
                %251 = vst [vmem:[%s149 + $0x190] sm:$0xff] %v250
                %v252 = vld [vmem:[%s148 + $0x13e0] sm:$0xff]
                %253 = vst [vmem:[%s149 + $0x198] sm:$0xff] %v252
                %v254 = vld [vmem:[%s148 + $0x13e8] sm:$0xff]
                %255 = vst [vmem:[%s149 + $0x1a0] sm:$0xff] %v254
                %v256 = vld [vmem:[%s148 + $0x13f0] sm:$0xff]
                %257 = vst [vmem:[%s149 + $0x1a8] sm:$0xff] %v256
                %v258 = vld [vmem:[%s148 + $0x13f8] sm:$0xff]
                %259 = vst [vmem:[%s149 + $0x1b0] sm:$0xff] %v258
                %v260 = vld [vmem:[%s148 + $0x1400] sm:$0xff]
                %261 = vst [vmem:[%s149 + $0x1b8] sm:$0xff] %v260
                %v262 = vld [vmem:[%s148 + $0x1408] sm:$0xff]
                %263 = vst [vmem:[%s149 + $0x1c0] sm:$0xff] %v262
                %v264 = vld [vmem:[%s148 + $0x1410] sm:$0xff]
                %265 = vst [vmem:[%s149 + $0x1c8] sm:$0xff] %v264
                %v266 = vld [vmem:[%s148 + $0x1418] sm:$0xff]
                %267 = vst [vmem:[%s149 + $0x1d0] sm:$0xff] %v266
                %v268 = vld [vmem:[%s148 + $0x1420] sm:$0xff]
                %269 = vst [vmem:[%s149 + $0x1d8] sm:$0xff] %v268
              $region41: #{convnet_forward.4} parent=35 // loop_footer
                %s147 = sadd.s32 1, %s143
              $region42: #{convnet_forward.4} parent=35 // loop_footer_branch
                %142 = sbr.rel target = $region38
              $region43: #{convnet_forward.4} parent=35 // loop_exit
                _
            $region36: #{convnet_forward.4} parent=31 // pred_fallthru
              _
            // Predicated region
            $region44: #{convnet_forward.4} parent=31 // pred_check
              _
            $region45: #{convnet_forward.4} parent=31 // pred_check_branch
              %271 = sbr.rel target = $region47
            $region46: #{convnet_forward.4} parent=31 // pred_region
              _
            $region47: #{convnet_forward.4} parent=31 // pred_fallthru
              _
          $region32: #{convnet_forward.4} parent=27 // pred_fallthru
            _
          %272 = vnop
        $region28: #{convnet_forward.4} parent=23 // pred_fallthru
          _
      $region24: #{convnet_forward.4} parent=5 // pred_fallthru
        _
      %p273 = scmp.le.s32.totalorder 1, %s9
      %p274 = scmp.lt.s32.totalorder %s9, 15
      %p275 = pnand %p273, %p274
      %p276 = pneg %p275
      // Predicated region
      $region48: #{convnet_forward.4} parent=5 // pred_check
        _
      $region49: #{convnet_forward.4} parent=5 // pred_check_branch
        %278 = sbr.rel (%p275) target = $region51
      $region50: #{convnet_forward.4} parent=5 // pred_region
        %s279 = ssub.s32 %s9, 1
        %s280 = sand.u32 %s43, 1
        %s281 = sand.u32 %s43, 1
        %s282 = smul.addr %s281, 480
        %s283 = scalar_lea.vmem [#allocation2], %s282
        // Predicated region
        $region52: #{convnet_forward.4} parent=50 // pred_check
          %p284 = pneg %p56
        $region53: #{convnet_forward.4} parent=50 // pred_check_branch
          %286 = sbr.rel (%p284) target = $region55
        $region54: #{convnet_forward.4} parent=50 // pred_region
          _
        $region55: #{convnet_forward.4} parent=50 // pred_fallthru
          _
        %p287 = pneg %p30
        %p288 = pneg %p27
        %s289 = sand.u32 %s43, 1
        %s290 = sand.u32 %s43, 1
        %s291 = smul.addr %s290, 480
        %s292 = scalar_lea.vmem [#allocation2], %s291
        %p293 = pneg %p56
        %p294 = pneg %p53
        %p295 = pneg %p77
        %p296 = pneg %p74
        %p297 = pneg %p103
        %p298 = pneg %p100
        %s299 = smul.u32 15, %s14
        %p300 = scmp.lt.s32.totalorder %s299, 209
        %s301 = scalar_select %p300, %s299, 209
        %s302 = smul.addr %s301, 8
        %s303 = scalar_lea.vmem %s3, %s302
        %s304 = smul.u32 15, %s14
        %s305 = smul.u32 15, %s14
        %p306 = scmp.lt.s32.totalorder %s305, 209
        %s307 = scalar_select %p306, %s305, 209
        %s308 = smul.addr %s307, 8
        %s309 = scalar_lea.vmem %s3, %s308
        %s310 = smul.u32 15, %s14
        %v311 = vld [vmem:[%s0] sm:$0xff]
        %v312 = vld [vmem:[%s283] sm:$0xff]
        %v313 = vld [vmem:[%s283 + $0x8] sm:$0xff]
        %v314 = vld [vmem:[%s283 + $0x10] sm:$0xff]
        %v315 = vld [vmem:[%s283 + $0x18] sm:$0xff]
        %v316 = vld [vmem:[%s283 + $0x20] sm:$0xff]
        %v317 = vld [vmem:[%s283 + $0x28] sm:$0xff]
        %v318 = vld [vmem:[%s283 + $0x30] sm:$0xff]
        %v319 = vld [vmem:[%s283 + $0x38] sm:$0xff]
        %v320 = vld [vmem:[%s283 + $0x40] sm:$0xff]
        %v321 = vld [vmem:[%s283 + $0x48] sm:$0xff]
        %v322 = vld [vmem:[%s283 + $0x50] sm:$0xff]
        %v323 = vld [vmem:[%s283 + $0x58] sm:$0xff]
        %v324 = vld [vmem:[%s283 + $0x60] sm:$0xff]
        %v325 = vld [vmem:[%s283 + $0x68] sm:$0xff]
        %v326 = vld [vmem:[%s283 + $0x70] sm:$0xff]
        %v327 = vld [vmem:[%s283 + $0x78] sm:$0xff]
        %v328 = vld [vmem:[%s283 + $0x80] sm:$0xff]
        %v329 = vld [vmem:[%s283 + $0x88] sm:$0xff]
        %v330 = vld [vmem:[%s283 + $0x90] sm:$0xff]
        %v331 = vld [vmem:[%s283 + $0x98] sm:$0xff]
        %v332 = vld [vmem:[%s283 + $0xa0] sm:$0xff]
        %v333 = vld [vmem:[%s283 + $0xa8] sm:$0xff]
        %v334 = vld [vmem:[%s283 + $0xb0] sm:$0xff]
        %v335 = vld [vmem:[%s283 + $0xb8] sm:$0xff]
        %v336 = vld [vmem:[%s283 + $0xc0] sm:$0xff]
        %v337 = vld [vmem:[%s283 + $0xc8] sm:$0xff]
        %v338 = vld [vmem:[%s283 + $0xd0] sm:$0xff]
        %v339 = vld [vmem:[%s283 + $0xd8] sm:$0xff]
        %v340 = vld [vmem:[%s283 + $0xe0] sm:$0xff]
        %v341 = vld [vmem:[%s283 + $0xe8] sm:$0xff]
        %v342 = vld [vmem:[%s283 + $0xf0] sm:$0xff]
        %v343 = vld [vmem:[%s283 + $0xf8] sm:$0xff]
        %v344 = vld [vmem:[%s283 + $0x100] sm:$0xff]
        %v345 = vld [vmem:[%s283 + $0x108] sm:$0xff]
        %v346 = vld [vmem:[%s283 + $0x110] sm:$0xff]
        %v347 = vld [vmem:[%s283 + $0x118] sm:$0xff]
        %v348 = vld [vmem:[%s283 + $0x120] sm:$0xff]
        %v349 = vld [vmem:[%s283 + $0x128] sm:$0xff]
        %v350 = vld [vmem:[%s283 + $0x130] sm:$0xff]
        %v351 = vld [vmem:[%s283 + $0x138] sm:$0xff]
        %v352 = vld [vmem:[%s283 + $0x140] sm:$0xff]
        %v353 = vld [vmem:[%s283 + $0x148] sm:$0xff]
        %v354 = vld [vmem:[%s283 + $0x150] sm:$0xff]
        %v355 = vld [vmem:[%s283 + $0x158] sm:$0xff]
        %v356 = vld [vmem:[%s283 + $0x160] sm:$0xff]
        %v357 = vld [vmem:[%s283 + $0x168] sm:$0x1]
        %v358 = vld [vmem:[%s283 + $0x170] sm:$0x1]
        %v359 = vld [vmem:[%s283 + $0x178] sm:$0x1]
        %v360 = vld [vmem:[%s283 + $0x180] sm:$0x1]
        %v361 = vld [vmem:[%s283 + $0x188] sm:$0x1]
        %v362 = vld [vmem:[%s283 + $0x190] sm:$0x1]
        %v363 = vld [vmem:[%s283 + $0x198] sm:$0x1]
        %v364 = vld [vmem:[%s283 + $0x1a0] sm:$0x1]
        %v365 = vld [vmem:[%s283 + $0x1a8] sm:$0x1]
        %v366 = vld [vmem:[%s283 + $0x1b0] sm:$0x1]
        %v367 = vld [vmem:[%s283 + $0x1b8] sm:$0x1]
        %v368 = vld [vmem:[%s283 + $0x1c0] sm:$0x1]
        %v369 = vld [vmem:[%s283 + $0x1c8] sm:$0x1]
        %v370 = vld [vmem:[%s283 + $0x1d0] sm:$0x1]
        %v371 = vld [vmem:[%s283 + $0x1d8] sm:$0x1]
        %v372 = vld [vmem:[%s2] sm:$0xff]
        %374 = vset.pattern.permute.xlu0 0
        %375 = vperm.xlu0 %374, %v372
        %v376 = vpop.permute.xlu0 %375
        %vm378 = vcmask 203776
        %v380 = vsel %vm378, %v311, 0
        %vm382 = vcmask 1040384
        %v384 = vsel %vm382, %v357, 0
        %v387 = vsel %vm382, %v358, 0
        %v390 = vsel %vm382, %v359, 0
        %v393 = vsel %vm382, %v360, 0
        %v396 = vsel %vm382, %v361, 0
        %v399 = vsel %vm382, %v362, 0
        %v402 = vsel %vm382, %v363, 0
        %v405 = vsel %vm382, %v364, 0
        %v408 = vsel %vm382, %v365, 0
        %v411 = vsel %vm382, %v366, 0
        %v414 = vsel %vm382, %v367, 0
        %v417 = vsel %vm382, %v368, 0
        %v420 = vsel %vm382, %v369, 0
        %v423 = vsel %vm382, %v370, 0
        %v426 = vsel %vm382, %v371, 0
        %428 = vmatpush.msra.mxu0 0.0
        %429 = vmatpush.msra.mxu0 0.0
        %430 = vmatpush.msra.mxu0 0.0
        %431 = vmatpush.msra.mxu0 0.0
        %432 = vmatpush.msra.mxu0 0.0
        %433 = vmatpush.msra.mxu0 0.0
        %434 = vmatpush.msra.mxu0 0.0
        %435 = vmatpush.msra.mxu0 0.0
        %436 = vmatpush.msra.mxu0 0.0
        %437 = vmatpush.msra.mxu0 0.0
        %438 = vmatpush.msra.mxu0 0.0
        %439 = vmatpush.msra.mxu0 0.0
        %440 = vmatpush.msra.mxu0 %v384
        %441 = vmatpush.msra.mxu0 %v342
        %442 = vmatpush.msra.mxu0 %v327
        %443 = vmatpush.msra.mxu0 %v312
        %444 = vmatmul.f32.gmra.mxu0 %v380
        %v445 = vpop.f32.mrf.mxu0
        %v446 = vadd.f32 %v376, %v445
        %447 = vdwg.mxu0
        %448 = vmatpush.msra.mxu0 0.0
        %449 = vmatpush.msra.mxu0 0.0
        %450 = vmatpush.msra.mxu0 0.0
        %451 = vmatpush.msra.mxu0 0.0
        %452 = vmatpush.msra.mxu0 0.0
        %453 = vmatpush.msra.mxu0 0.0
        %454 = vmatpush.msra.mxu0 0.0
        %455 = vmatpush.msra.mxu0 0.0
        %456 = vmatpush.msra.mxu0 0.0
        %457 = vmatpush.msra.mxu0 0.0
        %458 = vmatpush.msra.mxu0 0.0
        %459 = vmatpush.msra.mxu0 0.0
        %460 = vmatpush.msra.mxu0 %v387
        %461 = vmatpush.msra.mxu0 %v343
        %462 = vmatpush.msra.mxu0 %v328
        %463 = vmatpush.msra.mxu0 %v313
        %464 = vmatmul.f32.gmra.mxu0 %v380
        %v465 = vpop.f32.mrf.mxu0
        %v466 = vadd.f32 %v376, %v465
        %467 = vdwg.mxu0
        %468 = vmatpush.msra.mxu0 0.0
        %469 = vmatpush.msra.mxu0 0.0
        %470 = vmatpush.msra.mxu0 0.0
        %471 = vmatpush.msra.mxu0 0.0
        %472 = vmatpush.msra.mxu0 0.0
        %473 = vmatpush.msra.mxu0 0.0
        %474 = vmatpush.msra.mxu0 0.0
        %475 = vmatpush.msra.mxu0 0.0
        %476 = vmatpush.msra.mxu0 0.0
        %477 = vmatpush.msra.mxu0 0.0
        %478 = vmatpush.msra.mxu0 0.0
        %479 = vmatpush.msra.mxu0 0.0
        %480 = vmatpush.msra.mxu0 %v390
        %481 = vmatpush.msra.mxu0 %v344
        %482 = vmatpush.msra.mxu0 %v329
        %483 = vmatpush.msra.mxu0 %v314
        %484 = vmatmul.f32.gmra.mxu0 %v380
        %v485 = vpop.f32.mrf.mxu0
        %v486 = vadd.f32 %v376, %v485
        %487 = vdwg.mxu0
        %488 = vmatpush.msra.mxu0 0.0
        %489 = vmatpush.msra.mxu0 0.0
        %490 = vmatpush.msra.mxu0 0.0
        %491 = vmatpush.msra.mxu0 0.0
        %492 = vmatpush.msra.mxu0 0.0
        %493 = vmatpush.msra.mxu0 0.0
        %494 = vmatpush.msra.mxu0 0.0
        %495 = vmatpush.msra.mxu0 0.0
        %496 = vmatpush.msra.mxu0 0.0
        %497 = vmatpush.msra.mxu0 0.0
        %498 = vmatpush.msra.mxu0 0.0
        %499 = vmatpush.msra.mxu0 0.0
        %500 = vmatpush.msra.mxu0 %v393
        %501 = vmatpush.msra.mxu0 %v345
        %502 = vmatpush.msra.mxu0 %v330
        %503 = vmatpush.msra.mxu0 %v315
        %504 = vmatmul.f32.gmra.mxu0 %v380
        %v505 = vpop.f32.mrf.mxu0
        %v506 = vadd.f32 %v376, %v505
        %507 = vdwg.mxu0
        %508 = vmatpush.msra.mxu0 0.0
        %509 = vmatpush.msra.mxu0 0.0
        %510 = vmatpush.msra.mxu0 0.0
        %511 = vmatpush.msra.mxu0 0.0
        %512 = vmatpush.msra.mxu0 0.0
        %513 = vmatpush.msra.mxu0 0.0
        %514 = vmatpush.msra.mxu0 0.0
        %515 = vmatpush.msra.mxu0 0.0
        %516 = vmatpush.msra.mxu0 0.0
        %517 = vmatpush.msra.mxu0 0.0
        %518 = vmatpush.msra.mxu0 0.0
        %519 = vmatpush.msra.mxu0 0.0
        %520 = vmatpush.msra.mxu0 %v396
        %521 = vmatpush.msra.mxu0 %v346
        %522 = vmatpush.msra.mxu0 %v331
        %523 = vmatpush.msra.mxu0 %v316
        %524 = vmatmul.f32.gmra.mxu0 %v380
        %v525 = vpop.f32.mrf.mxu0
        %v526 = vadd.f32 %v376, %v525
        %527 = vdwg.mxu0
        %528 = vmatpush.msra.mxu0 0.0
        %529 = vmatpush.msra.mxu0 0.0
        %530 = vmatpush.msra.mxu0 0.0
        %531 = vmatpush.msra.mxu0 0.0
        %532 = vmatpush.msra.mxu0 0.0
        %533 = vmatpush.msra.mxu0 0.0
        %534 = vmatpush.msra.mxu0 0.0
        %535 = vmatpush.msra.mxu0 0.0
        %536 = vmatpush.msra.mxu0 0.0
        %537 = vmatpush.msra.mxu0 0.0
        %538 = vmatpush.msra.mxu0 0.0
        %539 = vmatpush.msra.mxu0 0.0
        %540 = vmatpush.msra.mxu0 %v399
        %541 = vmatpush.msra.mxu0 %v347
        %542 = vmatpush.msra.mxu0 %v332
        %543 = vmatpush.msra.mxu0 %v317
        %544 = vmatmul.f32.gmra.mxu0 %v380
        %v545 = vpop.f32.mrf.mxu0
        %v546 = vadd.f32 %v376, %v545
        %547 = vdwg.mxu0
        %548 = vmatpush.msra.mxu0 0.0
        %549 = vmatpush.msra.mxu0 0.0
        %550 = vmatpush.msra.mxu0 0.0
        %551 = vmatpush.msra.mxu0 0.0
        %552 = vmatpush.msra.mxu0 0.0
        %553 = vmatpush.msra.mxu0 0.0
        %554 = vmatpush.msra.mxu0 0.0
        %555 = vmatpush.msra.mxu0 0.0
        %556 = vmatpush.msra.mxu0 0.0
        %557 = vmatpush.msra.mxu0 0.0
        %558 = vmatpush.msra.mxu0 0.0
        %559 = vmatpush.msra.mxu0 0.0
        %560 = vmatpush.msra.mxu0 %v402
        %561 = vmatpush.msra.mxu0 %v348
        %562 = vmatpush.msra.mxu0 %v333
        %563 = vmatpush.msra.mxu0 %v318
        %564 = vmatmul.f32.gmra.mxu0 %v380
        %v565 = vpop.f32.mrf.mxu0
        %v566 = vadd.f32 %v376, %v565
        %567 = vdwg.mxu0
        %568 = vmatpush.msra.mxu0 0.0
        %569 = vmatpush.msra.mxu0 0.0
        %570 = vmatpush.msra.mxu0 0.0
        %571 = vmatpush.msra.mxu0 0.0
        %572 = vmatpush.msra.mxu0 0.0
        %573 = vmatpush.msra.mxu0 0.0
        %574 = vmatpush.msra.mxu0 0.0
        %575 = vmatpush.msra.mxu0 0.0
        %576 = vmatpush.msra.mxu0 0.0
        %577 = vmatpush.msra.mxu0 0.0
        %578 = vmatpush.msra.mxu0 0.0
        %579 = vmatpush.msra.mxu0 0.0
        %580 = vmatpush.msra.mxu0 %v405
        %581 = vmatpush.msra.mxu0 %v349
        %582 = vmatpush.msra.mxu0 %v334
        %583 = vmatpush.msra.mxu0 %v319
        %584 = vmatmul.f32.gmra.mxu0 %v380
        %v585 = vpop.f32.mrf.mxu0
        %v586 = vadd.f32 %v376, %v585
        %587 = vdwg.mxu0
        %588 = vmatpush.msra.mxu0 0.0
        %589 = vmatpush.msra.mxu0 0.0
        %590 = vmatpush.msra.mxu0 0.0
        %591 = vmatpush.msra.mxu0 0.0
        %592 = vmatpush.msra.mxu0 0.0
        %593 = vmatpush.msra.mxu0 0.0
        %594 = vmatpush.msra.mxu0 0.0
        %595 = vmatpush.msra.mxu0 0.0
        %596 = vmatpush.msra.mxu0 0.0
        %597 = vmatpush.msra.mxu0 0.0
        %598 = vmatpush.msra.mxu0 0.0
        %599 = vmatpush.msra.mxu0 0.0
        %600 = vmatpush.msra.mxu0 %v408
        %601 = vmatpush.msra.mxu0 %v350
        %602 = vmatpush.msra.mxu0 %v335
        %603 = vmatpush.msra.mxu0 %v320
        %604 = vmatmul.f32.gmra.mxu0 %v380
        %v605 = vpop.f32.mrf.mxu0
        %v606 = vadd.f32 %v376, %v605
        %607 = vdwg.mxu0
        %608 = vmatpush.msra.mxu0 0.0
        %609 = vmatpush.msra.mxu0 0.0
        %610 = vmatpush.msra.mxu0 0.0
        %611 = vmatpush.msra.mxu0 0.0
        %612 = vmatpush.msra.mxu0 0.0
        %613 = vmatpush.msra.mxu0 0.0
        %614 = vmatpush.msra.mxu0 0.0
        %615 = vmatpush.msra.mxu0 0.0
        %616 = vmatpush.msra.mxu0 0.0
        %617 = vmatpush.msra.mxu0 0.0
        %618 = vmatpush.msra.mxu0 0.0
        %619 = vmatpush.msra.mxu0 0.0
        %620 = vmatpush.msra.mxu0 %v411
        %621 = vmatpush.msra.mxu0 %v351
        %622 = vmatpush.msra.mxu0 %v336
        %623 = vmatpush.msra.mxu0 %v321
        %624 = vmatmul.f32.gmra.mxu0 %v380
        %v625 = vpop.f32.mrf.mxu0
        %v626 = vadd.f32 %v376, %v625
        %627 = vdwg.mxu0
        %628 = vmatpush.msra.mxu0 0.0
        %629 = vmatpush.msra.mxu0 0.0
        %630 = vmatpush.msra.mxu0 0.0
        %631 = vmatpush.msra.mxu0 0.0
        %632 = vmatpush.msra.mxu0 0.0
        %633 = vmatpush.msra.mxu0 0.0
        %634 = vmatpush.msra.mxu0 0.0
        %635 = vmatpush.msra.mxu0 0.0
        %636 = vmatpush.msra.mxu0 0.0
        %637 = vmatpush.msra.mxu0 0.0
        %638 = vmatpush.msra.mxu0 0.0
        %639 = vmatpush.msra.mxu0 0.0
        %640 = vmatpush.msra.mxu0 %v414
        %641 = vmatpush.msra.mxu0 %v352
        %642 = vmatpush.msra.mxu0 %v337
        %643 = vmatpush.msra.mxu0 %v322
        %644 = vmatmul.f32.gmra.mxu0 %v380
        %v645 = vpop.f32.mrf.mxu0
        %v646 = vadd.f32 %v376, %v645
        %647 = vdwg.mxu0
        %648 = vmatpush.msra.mxu0 0.0
        %649 = vmatpush.msra.mxu0 0.0
        %650 = vmatpush.msra.mxu0 0.0
        %651 = vmatpush.msra.mxu0 0.0
        %652 = vmatpush.msra.mxu0 0.0
        %653 = vmatpush.msra.mxu0 0.0
        %654 = vmatpush.msra.mxu0 0.0
        %655 = vmatpush.msra.mxu0 0.0
        %656 = vmatpush.msra.mxu0 0.0
        %657 = vmatpush.msra.mxu0 0.0
        %658 = vmatpush.msra.mxu0 0.0
        %659 = vmatpush.msra.mxu0 0.0
        %660 = vmatpush.msra.mxu0 %v417
        %661 = vmatpush.msra.mxu0 %v353
        %662 = vmatpush.msra.mxu0 %v338
        %663 = vmatpush.msra.mxu0 %v323
        %664 = vmatmul.f32.gmra.mxu0 %v380
        %v665 = vpop.f32.mrf.mxu0
        %v666 = vadd.f32 %v376, %v665
        %667 = vdwg.mxu0
        %668 = vmatpush.msra.mxu0 0.0
        %669 = vmatpush.msra.mxu0 0.0
        %670 = vmatpush.msra.mxu0 0.0
        %671 = vmatpush.msra.mxu0 0.0
        %672 = vmatpush.msra.mxu0 0.0
        %673 = vmatpush.msra.mxu0 0.0
        %674 = vmatpush.msra.mxu0 0.0
        %675 = vmatpush.msra.mxu0 0.0
        %676 = vmatpush.msra.mxu0 0.0
        %677 = vmatpush.msra.mxu0 0.0
        %678 = vmatpush.msra.mxu0 0.0
        %679 = vmatpush.msra.mxu0 0.0
        %680 = vmatpush.msra.mxu0 %v420
        %681 = vmatpush.msra.mxu0 %v354
        %682 = vmatpush.msra.mxu0 %v339
        %683 = vmatpush.msra.mxu0 %v324
        %684 = vmatmul.f32.gmra.mxu0 %v380
        %v685 = vpop.f32.mrf.mxu0
        %v686 = vadd.f32 %v376, %v685
        %687 = vdwg.mxu0
        %688 = vmatpush.msra.mxu0 0.0
        %689 = vmatpush.msra.mxu0 0.0
        %690 = vmatpush.msra.mxu0 0.0
        %691 = vmatpush.msra.mxu0 0.0
        %692 = vmatpush.msra.mxu0 0.0
        %693 = vmatpush.msra.mxu0 0.0
        %694 = vmatpush.msra.mxu0 0.0
        %695 = vmatpush.msra.mxu0 0.0
        %696 = vmatpush.msra.mxu0 0.0
        %697 = vmatpush.msra.mxu0 0.0
        %698 = vmatpush.msra.mxu0 0.0
        %699 = vmatpush.msra.mxu0 0.0
        %700 = vmatpush.msra.mxu0 %v423
        %701 = vmatpush.msra.mxu0 %v355
        %702 = vmatpush.msra.mxu0 %v340
        %703 = vmatpush.msra.mxu0 %v325
        %704 = vmatmul.f32.gmra.mxu0 %v380
        %v705 = vpop.f32.mrf.mxu0
        %v706 = vadd.f32 %v376, %v705
        %707 = vdwg.mxu0
        %708 = vmatpush.msra.mxu0 0.0
        %709 = vmatpush.msra.mxu0 0.0
        %710 = vmatpush.msra.mxu0 0.0
        %711 = vmatpush.msra.mxu0 0.0
        %712 = vmatpush.msra.mxu0 0.0
        %713 = vmatpush.msra.mxu0 0.0
        %714 = vmatpush.msra.mxu0 0.0
        %715 = vmatpush.msra.mxu0 0.0
        %716 = vmatpush.msra.mxu0 0.0
        %717 = vmatpush.msra.mxu0 0.0
        %718 = vmatpush.msra.mxu0 0.0
        %719 = vmatpush.msra.mxu0 0.0
        %720 = vmatpush.msra.mxu0 %v426
        %721 = vmatpush.msra.mxu0 %v356
        %722 = vmatpush.msra.mxu0 %v341
        %723 = vmatpush.msra.mxu0 %v326
        %724 = vmatmul.f32.gmra.mxu0 %v380
        %v725 = vpop.f32.mrf.mxu0
        %v726 = vadd.f32 %v376, %v725
        %727 = vdwg.mxu0
        %vm728 = vcmp.ge.f32.partialorder %v446, 0.0
        %vm729 = vcmp.ge.f32.partialorder %v466, 0.0
        %vm730 = vcmp.ge.f32.partialorder %v486, 0.0
        %vm731 = vcmp.ge.f32.partialorder %v506, 0.0
        %vm732 = vcmp.ge.f32.partialorder %v526, 0.0
        %vm733 = vcmp.ge.f32.partialorder %v546, 0.0
        %vm734 = vcmp.ge.f32.partialorder %v566, 0.0
        %vm735 = vcmp.ge.f32.partialorder %v586, 0.0
        %vm736 = vcmp.ge.f32.partialorder %v606, 0.0
        %vm737 = vcmp.ge.f32.partialorder %v626, 0.0
        %vm738 = vcmp.ge.f32.partialorder %v646, 0.0
        %vm739 = vcmp.ge.f32.partialorder %v666, 0.0
        %vm740 = vcmp.ge.f32.partialorder %v686, 0.0
        %vm741 = vcmp.ge.f32.partialorder %v706, 0.0
        %vm742 = vcmp.ge.f32.partialorder %v726, 0.0
        %v743 = vmul.f32 %v446, 0.01
        %v744 = vmul.f32 %v466, 0.01
        %v745 = vmul.f32 %v486, 0.01
        %v746 = vmul.f32 %v506, 0.01
        %v747 = vmul.f32 %v526, 0.01
        %v748 = vmul.f32 %v546, 0.01
        %v749 = vmul.f32 %v566, 0.01
        %v750 = vmul.f32 %v586, 0.01
        %v751 = vmul.f32 %v606, 0.01
        %v752 = vmul.f32 %v626, 0.01
        %v753 = vmul.f32 %v646, 0.01
        %v754 = vmul.f32 %v666, 0.01
        %v755 = vmul.f32 %v686, 0.01
        %v756 = vmul.f32 %v706, 0.01
        %v757 = vmul.f32 %v726, 0.01
        %v758 = vsel %vm728, %v446, %v743
        %v759 = vsel %vm729, %v466, %v744
        %v760 = vsel %vm730, %v486, %v745
        %v761 = vsel %vm731, %v506, %v746
        %v762 = vsel %vm732, %v526, %v747
        %v763 = vsel %vm733, %v546, %v748
        %v764 = vsel %vm734, %v566, %v749
        %v765 = vsel %vm735, %v586, %v750
        %v766 = vsel %vm736, %v606, %v751
        %v767 = vsel %vm737, %v626, %v752
        %v768 = vsel %vm738, %v646, %v753
        %v769 = vsel %vm739, %v666, %v754
        %v770 = vsel %vm740, %v686, %v755
        %v771 = vsel %vm741, %v706, %v756
        %v772 = vsel %vm742, %v726, %v757
        %773 = vst [vmem:[%s309] sm:$0xff] %v758
        %774 = vst [vmem:[%s309 + $0x8] sm:$0xff] %v759
        %775 = vst [vmem:[%s309 + $0x10] sm:$0xff] %v760
        %776 = vst [vmem:[%s309 + $0x18] sm:$0xff] %v761
        %777 = vst [vmem:[%s309 + $0x20] sm:$0xff] %v762
        %778 = vst [vmem:[%s309 + $0x28] sm:$0xff] %v763
        %779 = vst [vmem:[%s309 + $0x30] sm:$0xff] %v764
        %780 = vst [vmem:[%s309 + $0x38] sm:$0xff] %v765
        %781 = vst [vmem:[%s309 + $0x40] sm:$0xff] %v766
        %782 = vst [vmem:[%s309 + $0x48] sm:$0xff] %v767
        %783 = vst [vmem:[%s309 + $0x50] sm:$0xff] %v768
        %784 = vst [vmem:[%s309 + $0x58] sm:$0xff] %v769
        %785 = vst [vmem:[%s309 + $0x60] sm:$0xff] %v770
        %786 = vst [vmem:[%s309 + $0x68] sm:$0xff] %v771
        %787 = vst [vmem:[%s309 + $0x70] sm:$0xff] %v772
        %s788 = smul.u32 15, %s14
        %p789 = scmp.lt.s32.totalorder %s788, 209
        %s790 = scalar_select %p789, %s788, 209
        %s791 = smul.addr %s790, 8
        %s792 = scalar_lea.vmem %s3, %s791
        // Predicated region
        $region56: #{convnet_forward.4} parent=50 // pred_check
          %p793 = pneg %p100
        $region57: #{convnet_forward.4} parent=50 // pred_check_branch
          %795 = sbr.rel (%p793) target = $region59
        $region58: #{convnet_forward.4} parent=50 // pred_region
          %s796 = smul.u32 15, %s14
        $region59: #{convnet_forward.4} parent=50 // pred_fallthru
          _
      $region51: #{convnet_forward.4} parent=5 // pred_fallthru
        _
      %p797 = scmp.le.s32.totalorder 2, %s9
      // Predicated region
      $region60: #{convnet_forward.4} parent=5 // pred_check
        %p798 = pneg %p797
      $region61: #{convnet_forward.4} parent=5 // pred_check_branch
        %800 = sbr.rel (%p798) target = $region63
      $region62: #{convnet_forward.4} parent=5 // pred_region
        %s801 = ssub.s32 %s9, 2
        // Predicated region
        $region64: #{convnet_forward.4} parent=62 // pred_check
          %p802 = pneg %p106
        $region65: #{convnet_forward.4} parent=62 // pred_check_branch
          %804 = sbr.rel (%p802) target = $region67
        $region66: #{convnet_forward.4} parent=62 // pred_region
          %s805 = smul.u32 15, %s15
          %p806 = scmp.lt.s32.totalorder %s805, 209
          %s807 = scalar_select %p806, %s805, 209
          %s808 = smul.addr %s807, 8
          %s809 = scalar_lea.vmem %s3, %s808
        $region67: #{convnet_forward.4} parent=62 // pred_fallthru
          _
      $region63: #{convnet_forward.4} parent=5 // pred_fallthru
        _
    $region6: #{convnet_forward.4} parent=1 // loop_footer
      %s13 = sadd.s32 1, %s9
    $region7: #{convnet_forward.4} parent=1 // loop_footer_branch
      %8 = sbr.rel target = $region3
    $region8: #{convnet_forward.4} parent=1 // loop_exit
      _

// kernel: convnet_forward.5
$region0: #{convnet_forward.5}
  #allocation0 [shape = 'u32[]', space=smem, size = 0x4, offset = 0x4, fixed_abs, tag = 'smem constant byte address 0x4 - core index']
  #allocation1 [shape = 'u32[72,128]{1,0:T(1,128)}', space=vmem, size = 0x9000, scoped, tag = 'internal scratch']
  %s0 = inlined_call_operand.vmem [shape: f32[8,125], index: 0, kind: input, shape index: {}]
  %s1 = inlined_call_operand.vmem [shape: f32[125,6272], index: 1, kind: input, shape index: {}]
  %s2 = inlined_call_operand.vmem [shape: f32[8,1], index: 2, kind: input, shape index: {}]
  %s3 = inlined_call_operand.vmem [shape: f32[8,6272], index: 3, kind: output, shape index: {}]
  %s4 = sld [smem:[#allocation0]]
  $region68: #{convnet_forward.5} parent=0
    _
  %s6 = ssub.s32 1, %s4
  %s7 = scalar_select 0, %s6, %s4
  $region1: #{convnet_forward.5} parent=0
    #allocation2 [shape = 'u8[917504]{0}', space=vmem, size = 0xe0000, scoped, tag = 'input window, operand 1']
    loop: start=0, step=1, limit=9
    $region2: #{convnet_forward.5} parent=1 // loop_pre_header
      _
    $region3: #{convnet_forward.5} parent=1 // loop_header
      %s9 = sphi 0, %s13
      %p10 = scmp.ge.s32.totalorder %s9, 9
      %s17 = sphi 0, %s17
      %s19 = sphi 0, %s17
      %s20 = sphi 0, %s19
      %s34 = sphi 0, %s20
      %s40 = sphi 0, %s42
      %s43 = sphi 0, %s40
      %s44 = sphi 0, %s43
      %s60 = sphi 0, %s44
      %s64 = sphi 0, %s64
      %s66 = sphi 0, %s64
      %s67 = sphi 0, %s66
      %s81 = sphi 0, %s67
      %s87 = sphi 0, %s89
      %s90 = sphi 0, %s87
      %s91 = sphi 0, %s90
      %s107 = sphi 0, %s91
    $region4: #{convnet_forward.5} parent=1 // loop_header_branch
      %12 = sbr.rel (%p10) target = $region8
    $region5: #{convnet_forward.5} parent=1 // loop_body
      %s14 = ssub.s32 %s9, 1
      %s15 = ssub.s32 %s9, 2
      %s16 = sadd.s32 %s9, 1
      %s18 = sadd.s32 %s17, 1
      %p21 = scmp.eq.s32.totalorder %s9, 6
      %p22 = scmp.ne.s32.totalorder %s17, %s19
      %p23 = scmp.eq.s32.totalorder %s9, 0
      %p24 = por %p22, %p23
      %p25 = scmp.ne.s32.totalorder %s17, %s19
      %p26 = scmp.eq.s32.totalorder %s14, 6
      %p27 = por %p25, %p26
      %p28 = scmp.ne.s32.totalorder %s19, %s20
      %p29 = scmp.eq.s32.totalorder %s14, 0
      %p30 = por %p28, %p29
      %p31 = scmp.ne.s32.totalorder %s19, %s20
      %p32 = scmp.eq.s32.totalorder %s15, 6
      %p33 = por %p31, %p32
      %p35 = scmp.ne.s32.totalorder %s20, %s34
      %p36 = scmp.eq.s32.totalorder %s15, 0
      %p37 = por %p35, %p36
      %s38 = ssub.s32 %s9, %s16
      %p39 = scmp.eq.s32.totalorder %s38, 0
      %s41 = sadd.s32 %s40, 1
      %s42 = scalar_select %p39, %s40, %s41
      %p45 = pneg %p39
      %p46 = scmp.eq.s32.totalorder %s9, 6
      %p47 = por %p45, %p46
      %p48 = scmp.ne.s32.totalorder %s40, %s43
      %p49 = scmp.eq.s32.totalorder %s9, 0
      %p50 = por %p48, %p49
      %p51 = scmp.ne.s32.totalorder %s40, %s43
      %p52 = scmp.eq.s32.totalorder %s14, 6
      %p53 = por %p51, %p52
      %p54 = scmp.ne.s32.totalorder %s43, %s44
      %p55 = scmp.eq.s32.totalorder %s14, 0
      %p56 = por %p54, %p55
      %p57 = scmp.ne.s32.totalorder %s43, %s44
      %p58 = scmp.eq.s32.totalorder %s15, 6
      %p59 = por %p57, %p58
      %p61 = scmp.ne.s32.totalorder %s44, %s60
      %p62 = scmp.eq.s32.totalorder %s15, 0
      %p63 = por %p61, %p62
      %s65 = sadd.s32 %s64, 1
      %p68 = scmp.eq.s32.totalorder %s9, 6
      %p69 = scmp.ne.s32.totalorder %s64, %s66
      %p70 = scmp.eq.s32.totalorder %s9, 0
      %p71 = por %p69, %p70
      %p72 = scmp.ne.s32.totalorder %s64, %s66
      %p73 = scmp.eq.s32.totalorder %s14, 6
      %p74 = por %p72, %p73
      %p75 = scmp.ne.s32.totalorder %s66, %s67
      %p76 = scmp.eq.s32.totalorder %s14, 0
      %p77 = por %p75, %p76
      %p78 = scmp.ne.s32.totalorder %s66, %s67
      %p79 = scmp.eq.s32.totalorder %s15, 6
      %p80 = por %p78, %p79
      %p82 = scmp.ne.s32.totalorder %s67, %s81
      %p83 = scmp.eq.s32.totalorder %s15, 0
      %p84 = por %p82, %p83
      %s85 = ssub.s32 %s9, %s16
      %p86 = scmp.eq.s32.totalorder %s85, 0
      %s88 = sadd.s32 %s87, 1
      %s89 = scalar_select %p86, %s87, %s88
      %p92 = pneg %p86
      %p93 = scmp.eq.s32.totalorder %s9, 6
      %p94 = por %p92, %p93
      %p95 = scmp.ne.s32.totalorder %s87, %s90
      %p96 = scmp.eq.s32.totalorder %s9, 0
      %p97 = por %p95, %p96
      %p98 = scmp.ne.s32.totalorder %s87, %s90
      %p99 = scmp.eq.s32.totalorder %s14, 6
      %p100 = por %p98, %p99
      %p101 = scmp.ne.s32.totalorder %s90, %s91
      %p102 = scmp.eq.s32.totalorder %s14, 0
      %p103 = por %p101, %p102
      %p104 = scmp.ne.s32.totalorder %s90, %s91
      %p105 = scmp.eq.s32.totalorder %s15, 6
      %p106 = por %p104, %p105
      %p108 = scmp.ne.s32.totalorder %s91, %s107
      %p109 = scmp.eq.s32.totalorder %s15, 0
      %p110 = por %p108, %p109
      %p111 = scmp.le.s32.totalorder 1, %s9
      %p112 = scmp.lt.s32.totalorder %s9, 8
      %p113 = pnand %p111, %p112
      %p114 = pneg %p113
      // Predicated region
      $region9: #{convnet_forward.5} parent=5 // pred_check
        _
      $region10: #{convnet_forward.5} parent=5 // pred_check_branch
        %116 = sbr.rel (%p113) target = $region12
      $region11: #{convnet_forward.5} parent=5 // pred_region
        %s117 = ssub.s32 %s9, 1
        // Predicated region
        $region13: #{convnet_forward.5} parent=11 // pred_check
          %p118 = pneg %p30
        $region14: #{convnet_forward.5} parent=11 // pred_check_branch
          %120 = sbr.rel (%p118) target = $region16
        $region15: #{convnet_forward.5} parent=11 // pred_region
          _
        $region16: #{convnet_forward.5} parent=11 // pred_fallthru
          _
        // Predicated region
        $region17: #{convnet_forward.5} parent=11 // pred_check
          %p121 = pneg %p77
        $region18: #{convnet_forward.5} parent=11 // pred_check_branch
          %123 = sbr.rel (%p121) target = $region20
        $region19: #{convnet_forward.5} parent=11 // pred_region
          _
        $region20: #{convnet_forward.5} parent=11 // pred_fallthru
          _
      $region12: #{convnet_forward.5} parent=5 // pred_fallthru
        _
      %p124 = scmp.lt.s32.totalorder %s9, 7
      // Predicated region
      $region21: #{convnet_forward.5} parent=5 // pred_check
        %p125 = pneg %p124
      $region22: #{convnet_forward.5} parent=5 // pred_check_branch
        %127 = sbr.rel (%p125) target = $region24
      $region23: #{convnet_forward.5} parent=5 // pred_region
        // Predicated region
        $region25: #{convnet_forward.5} parent=23 // pred_check
          %p128 = pneg %p50
        $region26: #{convnet_forward.5} parent=23 // pred_check_branch
          %130 = sbr.rel (%p128) target = $region28
        $region27: #{convnet_forward.5} parent=23 // pred_region
          %s131 = sand.u32 %s40, 1
          %s132 = sand.u32 %s40, 1
          %s133 = smul.addr %s132, 896
          %s134 = scalar_lea.vmem [#allocation2], %s133
          %s135 = smul.u32 7, %s9
          %s136 = smul.addr %s135, 8
          %s137 = scalar_lea.vmem %s1, %s136
          // Predicated region
          $region29: #{convnet_forward.5} parent=27 // pred_check
            _
          $region30: #{convnet_forward.5} parent=27 // pred_check_branch
            %139 = sbr.rel (0) target = $region32
          $region31: #{convnet_forward.5} parent=27 // pred_region
            // Predicated region
            $region33: #{convnet_forward.5} parent=31 // pred_check
              _
            $region34: #{convnet_forward.5} parent=31 // pred_check_branch
              %141 = sbr.rel (0) target = $region36
            $region35: #{convnet_forward.5} parent=31 // pred_region
              loop: start=0, step=1, limit=1
              $region37: #{convnet_forward.5} parent=35 // loop_pre_header
                _
              $region38: #{convnet_forward.5} parent=35 // loop_header
                %s143 = sphi 0, %s147
                %p144 = scmp.ge.s32.totalorder %s143, 1
                %s148 = sphi %s137, %s137
                %s149 = sphi %s134, %s134
              $region39: #{convnet_forward.5} parent=35 // loop_header_branch
                %146 = sbr.rel (%p144) target = $region43
              $region40: #{convnet_forward.5} parent=35 // loop_body
                %v150 = vld [vmem:[%s148] sm:$0xff]
                %151 = vst [vmem:[%s149] sm:$0xff] %v150
                %v152 = vld [vmem:[%s148 + $0x8] sm:$0xff]
                %153 = vst [vmem:[%s149 + $0x8] sm:$0xff] %v152
                %v154 = vld [vmem:[%s148 + $0x10] sm:$0xff]
                %155 = vst [vmem:[%s149 + $0x10] sm:$0xff] %v154
                %v156 = vld [vmem:[%s148 + $0x18] sm:$0xff]
                %157 = vst [vmem:[%s149 + $0x18] sm:$0xff] %v156
                %v158 = vld [vmem:[%s148 + $0x20] sm:$0xff]
                %159 = vst [vmem:[%s149 + $0x20] sm:$0xff] %v158
                %v160 = vld [vmem:[%s148 + $0x28] sm:$0xff]
                %161 = vst [vmem:[%s149 + $0x28] sm:$0xff] %v160
                %v162 = vld [vmem:[%s148 + $0x30] sm:$0xff]
                %163 = vst [vmem:[%s149 + $0x30] sm:$0xff] %v162
                %v164 = vld [vmem:[%s148 + $0x188] sm:$0xff]
                %165 = vst [vmem:[%s149 + $0x38] sm:$0xff] %v164
                %v166 = vld [vmem:[%s148 + $0x190] sm:$0xff]
                %167 = vst [vmem:[%s149 + $0x40] sm:$0xff] %v166
                %v168 = vld [vmem:[%s148 + $0x198] sm:$0xff]
                %169 = vst [vmem:[%s149 + $0x48] sm:$0xff] %v168
                %v170 = vld [vmem:[%s148 + $0x1a0] sm:$0xff]
                %171 = vst [vmem:[%s149 + $0x50] sm:$0xff] %v170
                %v172 = vld [vmem:[%s148 + $0x1a8] sm:$0xff]
                %173 = vst [vmem:[%s149 + $0x58] sm:$0xff] %v172
                %v174 = vld [vmem:[%s148 + $0x1b0] sm:$0xff]
                %175 = vst [vmem:[%s149 + $0x60] sm:$0xff] %v174
                %v176 = vld [vmem:[%s148 + $0x1b8] sm:$0xff]
                %177 = vst [vmem:[%s149 + $0x68] sm:$0xff] %v176
                %v178 = vld [vmem:[%s148 + $0x310] sm:$0xff]
                %179 = vst [vmem:[%s149 + $0x70] sm:$0xff] %v178
                %v180 = vld [vmem:[%s148 + $0x318] sm:$0xff]
                %181 = vst [vmem:[%s149 + $0x78] sm:$0xff] %v180
                %v182 = vld [vmem:[%s148 + $0x320] sm:$0xff]
                %183 = vst [vmem:[%s149 + $0x80] sm:$0xff] %v182
                %v184 = vld [vmem:[%s148 + $0x328] sm:$0xff]
                %185 = vst [vmem:[%s149 + $0x88] sm:$0xff] %v184
                %v186 = vld [vmem:[%s148 + $0x330] sm:$0xff]
                %187 = vst [vmem:[%s149 + $0x90] sm:$0xff] %v186
                %v188 = vld [vmem:[%s148 + $0x338] sm:$0xff]
                %189 = vst [vmem:[%s149 + $0x98] sm:$0xff] %v188
                %v190 = vld [vmem:[%s148 + $0x340] sm:$0xff]
                %191 = vst [vmem:[%s149 + $0xa0] sm:$0xff] %v190
                %v192 = vld [vmem:[%s148 + $0x498] sm:$0xff]
                %193 = vst [vmem:[%s149 + $0xa8] sm:$0xff] %v192
                %v194 = vld [vmem:[%s148 + $0x4a0] sm:$0xff]
                %195 = vst [vmem:[%s149 + $0xb0] sm:$0xff] %v194
                %v196 = vld [vmem:[%s148 + $0x4a8] sm:$0xff]
                %197 = vst [vmem:[%s149 + $0xb8] sm:$0xff] %v196
                %v198 = vld [vmem:[%s148 + $0x4b0] sm:$0xff]
                %199 = vst [vmem:[%s149 + $0xc0] sm:$0xff] %v198
                %v200 = vld [vmem:[%s148 + $0x4b8] sm:$0xff]
                %201 = vst [vmem:[%s149 + $0xc8] sm:$0xff] %v200
                %v202 = vld [vmem:[%s148 + $0x4c0] sm:$0xff]
                %203 = vst [vmem:[%s149 + $0xd0] sm:$0xff] %v202
                %v204 = vld [vmem:[%s148 + $0x4c8] sm:$0xff]
                %205 = vst [vmem:[%s149 + $0xd8] sm:$0xff] %v204
                %v206 = vld [vmem:[%s148 + $0x620] sm:$0xff]
                %207 = vst [vmem:[%s149 + $0xe0] sm:$0xff] %v206
                %v208 = vld [vmem:[%s148 + $0x628] sm:$0xff]
                %209 = vst [vmem:[%s149 + $0xe8] sm:$0xff] %v208
                %v210 = vld [vmem:[%s148 + $0x630] sm:$0xff]
                %211 = vst [vmem:[%s149 + $0xf0] sm:$0xff] %v210
                %v212 = vld [vmem:[%s148 + $0x638] sm:$0xff]
                %213 = vst [vmem:[%s149 + $0xf8] sm:$0xff] %v212
                %v214 = vld [vmem:[%s148 + $0x640] sm:$0xff]
                %215 = vst [vmem:[%s149 + $0x100] sm:$0xff] %v214
                %v216 = vld [vmem:[%s148 + $0x648] sm:$0xff]
                %217 = vst [vmem:[%s149 + $0x108] sm:$0xff] %v216
                %v218 = vld [vmem:[%s148 + $0x650] sm:$0xff]
                %219 = vst [vmem:[%s149 + $0x110] sm:$0xff] %v218
                %v220 = vld [vmem:[%s148 + $0x7a8] sm:$0xff]
                %221 = vst [vmem:[%s149 + $0x118] sm:$0xff] %v220
                %v222 = vld [vmem:[%s148 + $0x7b0] sm:$0xff]
                %223 = vst [vmem:[%s149 + $0x120] sm:$0xff] %v222
                %v224 = vld [vmem:[%s148 + $0x7b8] sm:$0xff]
                %225 = vst [vmem:[%s149 + $0x128] sm:$0xff] %v224
                %v226 = vld [vmem:[%s148 + $0x7c0] sm:$0xff]
                %227 = vst [vmem:[%s149 + $0x130] sm:$0xff] %v226
                %v228 = vld [vmem:[%s148 + $0x7c8] sm:$0xff]
                %229 = vst [vmem:[%s149 + $0x138] sm:$0xff] %v228
                %v230 = vld [vmem:[%s148 + $0x7d0] sm:$0xff]
                %231 = vst [vmem:[%s149 + $0x140] sm:$0xff] %v230
                %v232 = vld [vmem:[%s148 + $0x7d8] sm:$0xff]
                %233 = vst [vmem:[%s149 + $0x148] sm:$0xff] %v232
                %v234 = vld [vmem:[%s148 + $0x930] sm:$0xff]
                %235 = vst [vmem:[%s149 + $0x150] sm:$0xff] %v234
                %v236 = vld [vmem:[%s148 + $0x938] sm:$0xff]
                %237 = vst [vmem:[%s149 + $0x158] sm:$0xff] %v236
                %v238 = vld [vmem:[%s148 + $0x940] sm:$0xff]
                %239 = vst [vmem:[%s149 + $0x160] sm:$0xff] %v238
                %v240 = vld [vmem:[%s148 + $0x948] sm:$0xff]
                %241 = vst [vmem:[%s149 + $0x168] sm:$0xff] %v240
                %v242 = vld [vmem:[%s148 + $0x950] sm:$0xff]
                %243 = vst [vmem:[%s149 + $0x170] sm:$0xff] %v242
                %v244 = vld [vmem:[%s148 + $0x958] sm:$0xff]
                %245 = vst [vmem:[%s149 + $0x178] sm:$0xff] %v244
                %v246 = vld [vmem:[%s148 + $0x960] sm:$0xff]
                %247 = vst [vmem:[%s149 + $0x180] sm:$0xff] %v246
                %v248 = vld [vmem:[%s148 + $0xab8] sm:$0xff]
                %249 = vst [vmem:[%s149 + $0x188] sm:$0xff] %v248
                %v250 = vld [vmem:[%s148 + $0xac0] sm:$0xff]
                %251 = vst [vmem:[%s149 + $0x190] sm:$0xff] %v250
                %v252 = vld [vmem:[%s148 + $0xac8] sm:$0xff]
                %253 = vst [vmem:[%s149 + $0x198] sm:$0xff] %v252
                %v254 = vld [vmem:[%s148 + $0xad0] sm:$0xff]
                %255 = vst [vmem:[%s149 + $0x1a0] sm:$0xff] %v254
                %v256 = vld [vmem:[%s148 + $0xad8] sm:$0xff]
                %257 = vst [vmem:[%s149 + $0x1a8] sm:$0xff] %v256
                %v258 = vld [vmem:[%s148 + $0xae0] sm:$0xff]
                %259 = vst [vmem:[%s149 + $0x1b0] sm:$0xff] %v258
                %v260 = vld [vmem:[%s148 + $0xae8] sm:$0xff]
                %261 = vst [vmem:[%s149 + $0x1b8] sm:$0xff] %v260
                %v262 = vld [vmem:[%s148 + $0xc40] sm:$0xff]
                %263 = vst [vmem:[%s149 + $0x1c0] sm:$0xff] %v262
                %v264 = vld [vmem:[%s148 + $0xc48] sm:$0xff]
                %265 = vst [vmem:[%s149 + $0x1c8] sm:$0xff] %v264
                %v266 = vld [vmem:[%s148 + $0xc50] sm:$0xff]
                %267 = vst [vmem:[%s149 + $0x1d0] sm:$0xff] %v266
                %v268 = vld [vmem:[%s148 + $0xc58] sm:$0xff]
                %269 = vst [vmem:[%s149 + $0x1d8] sm:$0xff] %v268
                %v270 = vld [vmem:[%s148 + $0xc60] sm:$0xff]
                %271 = vst [vmem:[%s149 + $0x1e0] sm:$0xff] %v270
                %v272 = vld [vmem:[%s148 + $0xc68] sm:$0xff]
                %273 = vst [vmem:[%s149 + $0x1e8] sm:$0xff] %v272
                %v274 = vld [vmem:[%s148 + $0xc70] sm:$0xff]
                %275 = vst [vmem:[%s149 + $0x1f0] sm:$0xff] %v274
                %v276 = vld [vmem:[%s148 + $0xdc8] sm:$0xff]
                %277 = vst [vmem:[%s149 + $0x1f8] sm:$0xff] %v276
                %v278 = vld [vmem:[%s148 + $0xdd0] sm:$0xff]
                %279 = vst [vmem:[%s149 + $0x200] sm:$0xff] %v278
                %v280 = vld [vmem:[%s148 + $0xdd8] sm:$0xff]
                %281 = vst [vmem:[%s149 + $0x208] sm:$0xff] %v280
                %v282 = vld [vmem:[%s148 + $0xde0] sm:$0xff]
                %283 = vst [vmem:[%s149 + $0x210] sm:$0xff] %v282
                %v284 = vld [vmem:[%s148 + $0xde8] sm:$0xff]
                %285 = vst [vmem:[%s149 + $0x218] sm:$0xff] %v284
                %v286 = vld [vmem:[%s148 + $0xdf0] sm:$0xff]
                %287 = vst [vmem:[%s149 + $0x220] sm:$0xff] %v286
                %v288 = vld [vmem:[%s148 + $0xdf8] sm:$0xff]
                %289 = vst [vmem:[%s149 + $0x228] sm:$0xff] %v288
                %v290 = vld [vmem:[%s148 + $0xf50] sm:$0xff]
                %291 = vst [vmem:[%s149 + $0x230] sm:$0xff] %v290
                %v292 = vld [vmem:[%s148 + $0xf58] sm:$0xff]
                %293 = vst [vmem:[%s149 + $0x238] sm:$0xff] %v292
                %v294 = vld [vmem:[%s148 + $0xf60] sm:$0xff]
                %295 = vst [vmem:[%s149 + $0x240] sm:$0xff] %v294
                %v296 = vld [vmem:[%s148 + $0xf68] sm:$0xff]
                %297 = vst [vmem:[%s149 + $0x248] sm:$0xff] %v296
                %v298 = vld [vmem:[%s148 + $0xf70] sm:$0xff]
                %299 = vst [vmem:[%s149 + $0x250] sm:$0xff] %v298
                %v300 = vld [vmem:[%s148 + $0xf78] sm:$0xff]
                %301 = vst [vmem:[%s149 + $0x258] sm:$0xff] %v300
                %v302 = vld [vmem:[%s148 + $0xf80] sm:$0xff]
                %303 = vst [vmem:[%s149 + $0x260] sm:$0xff] %v302
                %v304 = vld [vmem:[%s148 + $0x10d8] sm:$0xff]
                %305 = vst [vmem:[%s149 + $0x268] sm:$0xff] %v304
                %v306 = vld [vmem:[%s148 + $0x10e0] sm:$0xff]
                %307 = vst [vmem:[%s149 + $0x270] sm:$0xff] %v306
                %v308 = vld [vmem:[%s148 + $0x10e8] sm:$0xff]
                %309 = vst [vmem:[%s149 + $0x278] sm:$0xff] %v308
                %v310 = vld [vmem:[%s148 + $0x10f0] sm:$0xff]
                %311 = vst [vmem:[%s149 + $0x280] sm:$0xff] %v310
                %v312 = vld [vmem:[%s148 + $0x10f8] sm:$0xff]
                %313 = vst [vmem:[%s149 + $0x288] sm:$0xff] %v312
                %v314 = vld [vmem:[%s148 + $0x1100] sm:$0xff]
                %315 = vst [vmem:[%s149 + $0x290] sm:$0xff] %v314
                %v316 = vld [vmem:[%s148 + $0x1108] sm:$0xff]
                %317 = vst [vmem:[%s149 + $0x298] sm:$0xff] %v316
                %v318 = vld [vmem:[%s148 + $0x1260] sm:$0xff]
                %319 = vst [vmem:[%s149 + $0x2a0] sm:$0xff] %v318
                %v320 = vld [vmem:[%s148 + $0x1268] sm:$0xff]
                %321 = vst [vmem:[%s149 + $0x2a8] sm:$0xff] %v320
                %v322 = vld [vmem:[%s148 + $0x1270] sm:$0xff]
                %323 = vst [vmem:[%s149 + $0x2b0] sm:$0xff] %v322
                %v324 = vld [vmem:[%s148 + $0x1278] sm:$0xff]
                %325 = vst [vmem:[%s149 + $0x2b8] sm:$0xff] %v324
                %v326 = vld [vmem:[%s148 + $0x1280] sm:$0xff]
                %327 = vst [vmem:[%s149 + $0x2c0] sm:$0xff] %v326
                %v328 = vld [vmem:[%s148 + $0x1288] sm:$0xff]
                %329 = vst [vmem:[%s149 + $0x2c8] sm:$0xff] %v328
                %v330 = vld [vmem:[%s148 + $0x1290] sm:$0xff]
                %331 = vst [vmem:[%s149 + $0x2d0] sm:$0xff] %v330
                %v332 = vld [vmem:[%s148 + $0x13e8] sm:$0xff]
                %333 = vst [vmem:[%s149 + $0x2d8] sm:$0xff] %v332
                %v334 = vld [vmem:[%s148 + $0x13f0] sm:$0xff]
                %335 = vst [vmem:[%s149 + $0x2e0] sm:$0xff] %v334
                %v336 = vld [vmem:[%s148 + $0x13f8] sm:$0xff]
                %337 = vst [vmem:[%s149 + $0x2e8] sm:$0xff] %v336
                %v338 = vld [vmem:[%s148 + $0x1400] sm:$0xff]
                %339 = vst [vmem:[%s149 + $0x2f0] sm:$0xff] %v338
                %v340 = vld [vmem:[%s148 + $0x1408] sm:$0xff]
                %341 = vst [vmem:[%s149 + $0x2f8] sm:$0xff] %v340
                %v342 = vld [vmem:[%s148 + $0x1410] sm:$0xff]
                %343 = vst [vmem:[%s149 + $0x300] sm:$0xff] %v342
                %v344 = vld [vmem:[%s148 + $0x1418] sm:$0xff]
                %345 = vst [vmem:[%s149 + $0x308] sm:$0xff] %v344
                %v346 = vld [vmem:[%s148 + $0x1570] sm:$0xff]
                %347 = vst [vmem:[%s149 + $0x310] sm:$0xff] %v346
                %v348 = vld [vmem:[%s148 + $0x1578] sm:$0xff]
                %349 = vst [vmem:[%s149 + $0x318] sm:$0xff] %v348
                %v350 = vld [vmem:[%s148 + $0x1580] sm:$0xff]
                %351 = vst [vmem:[%s149 + $0x320] sm:$0xff] %v350
                %v352 = vld [vmem:[%s148 + $0x1588] sm:$0xff]
                %353 = vst [vmem:[%s149 + $0x328] sm:$0xff] %v352
                %v354 = vld [vmem:[%s148 + $0x1590] sm:$0xff]
                %355 = vst [vmem:[%s149 + $0x330] sm:$0xff] %v354
                %v356 = vld [vmem:[%s148 + $0x1598] sm:$0xff]
                %357 = vst [vmem:[%s149 + $0x338] sm:$0xff] %v356
                %v358 = vld [vmem:[%s148 + $0x15a0] sm:$0xff]
                %359 = vst [vmem:[%s149 + $0x340] sm:$0xff] %v358
                %v360 = vld [vmem:[%s148 + $0x16f8] sm:$0xff]
                %361 = vst [vmem:[%s149 + $0x348] sm:$0xff] %v360
                %v362 = vld [vmem:[%s148 + $0x1700] sm:$0xff]
                %363 = vst [vmem:[%s149 + $0x350] sm:$0xff] %v362
                %v364 = vld [vmem:[%s148 + $0x1708] sm:$0xff]
                %365 = vst [vmem:[%s149 + $0x358] sm:$0xff] %v364
                %v366 = vld [vmem:[%s148 + $0x1710] sm:$0xff]
                %367 = vst [vmem:[%s149 + $0x360] sm:$0xff] %v366
                %v368 = vld [vmem:[%s148 + $0x1718] sm:$0xff]
                %369 = vst [vmem:[%s149 + $0x368] sm:$0xff] %v368
                %v370 = vld [vmem:[%s148 + $0x1720] sm:$0xff]
                %371 = vst [vmem:[%s149 + $0x370] sm:$0xff] %v370
                %v372 = vld [vmem:[%s148 + $0x1728] sm:$0xff]
                %373 = vst [vmem:[%s149 + $0x378] sm:$0xff] %v372
              $region41: #{convnet_forward.5} parent=35 // loop_footer
                %s147 = sadd.s32 1, %s143
              $region42: #{convnet_forward.5} parent=35 // loop_footer_branch
                %142 = sbr.rel target = $region38
              $region43: #{convnet_forward.5} parent=35 // loop_exit
                _
            $region36: #{convnet_forward.5} parent=31 // pred_fallthru
              _
            // Predicated region
            $region44: #{convnet_forward.5} parent=31 // pred_check
              _
            $region45: #{convnet_forward.5} parent=31 // pred_check_branch
              %375 = sbr.rel target = $region47
            $region46: #{convnet_forward.5} parent=31 // pred_region
              _
            $region47: #{convnet_forward.5} parent=31 // pred_fallthru
              _
          $region32: #{convnet_forward.5} parent=27 // pred_fallthru
            _
          %376 = vnop
        $region28: #{convnet_forward.5} parent=23 // pred_fallthru
          _
      $region24: #{convnet_forward.5} parent=5 // pred_fallthru
        _
      %p377 = scmp.le.s32.totalorder 1, %s9
      %p378 = scmp.lt.s32.totalorder %s9, 8
      %p379 = pnand %p377, %p378
      %p380 = pneg %p379
      // Predicated region
      $region48: #{convnet_forward.5} parent=5 // pred_check
        _
      $region49: #{convnet_forward.5} parent=5 // pred_check_branch
        %382 = sbr.rel (%p379) target = $region51
      $region50: #{convnet_forward.5} parent=5 // pred_region
        %s383 = ssub.s32 %s9, 1
        %s384 = sand.u32 %s43, 1
        %s385 = sand.u32 %s43, 1
        %s386 = smul.addr %s385, 896
        %s387 = scalar_lea.vmem [#allocation2], %s386
        // Predicated region
        $region52: #{convnet_forward.5} parent=50 // pred_check
          %p388 = pneg %p56
        $region53: #{convnet_forward.5} parent=50 // pred_check_branch
          %390 = sbr.rel (%p388) target = $region55
        $region54: #{convnet_forward.5} parent=50 // pred_region
          _
        $region55: #{convnet_forward.5} parent=50 // pred_fallthru
          _
        %p391 = pneg %p30
        %p392 = pneg %p27
        %s393 = sand.u32 %s43, 1
        %s394 = sand.u32 %s43, 1
        %s395 = smul.addr %s394, 896
        %s396 = scalar_lea.vmem [#allocation2], %s395
        %p397 = pneg %p56
        %p398 = pneg %p53
        %p399 = pneg %p77
        %p400 = pneg %p74
        %p401 = pneg %p103
        %p402 = pneg %p100
        %s403 = smul.u32 7, %s14
        %p404 = scmp.lt.s32.totalorder %s403, 48
        %s405 = scalar_select %p404, %s403, 48
        %s406 = smul.addr %s405, 8
        %s407 = scalar_lea.vmem %s3, %s406
        %s408 = smul.u32 7, %s14
        %s409 = smul.u32 7, %s14
        %p410 = scmp.lt.s32.totalorder %s409, 48
        %s411 = scalar_select %p410, %s409, 48
        %s412 = smul.addr %s411, 8
        %s413 = scalar_lea.vmem %s3, %s412
        %s414 = smul.u32 7, %s14
        %v415 = vld [vmem:[%s0] sm:$0xff]
        %v416 = vld [vmem:[%s387] sm:$0xff]
        %v417 = vld [vmem:[%s387 + $0x8] sm:$0xff]
        %v418 = vld [vmem:[%s387 + $0x10] sm:$0xff]
        %v419 = vld [vmem:[%s387 + $0x18] sm:$0xff]
        %v420 = vld [vmem:[%s387 + $0x20] sm:$0xff]
        %v421 = vld [vmem:[%s387 + $0x28] sm:$0xff]
        %v422 = vld [vmem:[%s387 + $0x30] sm:$0xff]
        %v423 = vld [vmem:[%s387 + $0x38] sm:$0xff]
        %v424 = vld [vmem:[%s387 + $0x40] sm:$0xff]
        %v425 = vld [vmem:[%s387 + $0x48] sm:$0xff]
        %v426 = vld [vmem:[%s387 + $0x50] sm:$0xff]
        %v427 = vld [vmem:[%s387 + $0x58] sm:$0xff]
        %v428 = vld [vmem:[%s387 + $0x60] sm:$0xff]
        %v429 = vld [vmem:[%s387 + $0x68] sm:$0xff]
        %v430 = vld [vmem:[%s387 + $0x70] sm:$0xff]
        %v431 = vld [vmem:[%s387 + $0x78] sm:$0xff]
        %v432 = vld [vmem:[%s387 + $0x80] sm:$0xff]
        %v433 = vld [vmem:[%s387 + $0x88] sm:$0xff]
        %v434 = vld [vmem:[%s387 + $0x90] sm:$0xff]
        %v435 = vld [vmem:[%s387 + $0x98] sm:$0xff]
        %v436 = vld [vmem:[%s387 + $0xa0] sm:$0xff]
        %v437 = vld [vmem:[%s387 + $0xa8] sm:$0xff]
        %v438 = vld [vmem:[%s387 + $0xb0] sm:$0xff]
        %v439 = vld [vmem:[%s387 + $0xb8] sm:$0xff]
        %v440 = vld [vmem:[%s387 + $0xc0] sm:$0xff]
        %v441 = vld [vmem:[%s387 + $0xc8] sm:$0xff]
        %v442 = vld [vmem:[%s387 + $0xd0] sm:$0xff]
        %v443 = vld [vmem:[%s387 + $0xd8] sm:$0xff]
        %v444 = vld [vmem:[%s387 + $0xe0] sm:$0xff]
        %v445 = vld [vmem:[%s387 + $0xe8] sm:$0xff]
        %v446 = vld [vmem:[%s387 + $0xf0] sm:$0xff]
        %v447 = vld [vmem:[%s387 + $0xf8] sm:$0xff]
        %v448 = vld [vmem:[%s387 + $0x100] sm:$0xff]
        %v449 = vld [vmem:[%s387 + $0x108] sm:$0xff]
        %v450 = vld [vmem:[%s387 + $0x110] sm:$0xff]
        %v451 = vld [vmem:[%s387 + $0x118] sm:$0xff]
        %v452 = vld [vmem:[%s387 + $0x120] sm:$0xff]
        %v453 = vld [vmem:[%s387 + $0x128] sm:$0xff]
        %v454 = vld [vmem:[%s387 + $0x130] sm:$0xff]
        %v455 = vld [vmem:[%s387 + $0x138] sm:$0xff]
        %v456 = vld [vmem:[%s387 + $0x140] sm:$0xff]
        %v457 = vld [vmem:[%s387 + $0x148] sm:$0xff]
        %v458 = vld [vmem:[%s387 + $0x150] sm:$0xff]
        %v459 = vld [vmem:[%s387 + $0x158] sm:$0xff]
        %v460 = vld [vmem:[%s387 + $0x160] sm:$0xff]
        %v461 = vld [vmem:[%s387 + $0x168] sm:$0xff]
        %v462 = vld [vmem:[%s387 + $0x170] sm:$0xff]
        %v463 = vld [vmem:[%s387 + $0x178] sm:$0xff]
        %v464 = vld [vmem:[%s387 + $0x180] sm:$0xff]
        %v465 = vld [vmem:[%s387 + $0x188] sm:$0xff]
        %v466 = vld [vmem:[%s387 + $0x190] sm:$0xff]
        %v467 = vld [vmem:[%s387 + $0x198] sm:$0xff]
        %v468 = vld [vmem:[%s387 + $0x1a0] sm:$0xff]
        %v469 = vld [vmem:[%s387 + $0x1a8] sm:$0xff]
        %v470 = vld [vmem:[%s387 + $0x1b0] sm:$0xff]
        %v471 = vld [vmem:[%s387 + $0x1b8] sm:$0xff]
        %v472 = vld [vmem:[%s387 + $0x1c0] sm:$0xff]
        %v473 = vld [vmem:[%s387 + $0x1c8] sm:$0xff]
        %v474 = vld [vmem:[%s387 + $0x1d0] sm:$0xff]
        %v475 = vld [vmem:[%s387 + $0x1d8] sm:$0xff]
        %v476 = vld [vmem:[%s387 + $0x1e0] sm:$0xff]
        %v477 = vld [vmem:[%s387 + $0x1e8] sm:$0xff]
        %v478 = vld [vmem:[%s387 + $0x1f0] sm:$0xff]
        %v479 = vld [vmem:[%s387 + $0x1f8] sm:$0xff]
        %v480 = vld [vmem:[%s387 + $0x200] sm:$0xff]
        %v481 = vld [vmem:[%s387 + $0x208] sm:$0xff]
        %v482 = vld [vmem:[%s387 + $0x210] sm:$0xff]
        %v483 = vld [vmem:[%s387 + $0x218] sm:$0xff]
        %v484 = vld [vmem:[%s387 + $0x220] sm:$0xff]
        %v485 = vld [vmem:[%s387 + $0x228] sm:$0xff]
        %v486 = vld [vmem:[%s387 + $0x230] sm:$0xff]
        %v487 = vld [vmem:[%s387 + $0x238] sm:$0xff]
        %v488 = vld [vmem:[%s387 + $0x240] sm:$0xff]
        %v489 = vld [vmem:[%s387 + $0x248] sm:$0xff]
        %v490 = vld [vmem:[%s387 + $0x250] sm:$0xff]
        %v491 = vld [vmem:[%s387 + $0x258] sm:$0xff]
        %v492 = vld [vmem:[%s387 + $0x260] sm:$0xff]
        %v493 = vld [vmem:[%s387 + $0x268] sm:$0xff]
        %v494 = vld [vmem:[%s387 + $0x270] sm:$0xff]
        %v495 = vld [vmem:[%s387 + $0x278] sm:$0xff]
        %v496 = vld [vmem:[%s387 + $0x280] sm:$0xff]
        %v497 = vld [vmem:[%s387 + $0x288] sm:$0xff]
        %v498 = vld [vmem:[%s387 + $0x290] sm:$0xff]
        %v499 = vld [vmem:[%s387 + $0x298] sm:$0xff]
        %v500 = vld [vmem:[%s387 + $0x2a0] sm:$0xff]
        %v501 = vld [vmem:[%s387 + $0x2a8] sm:$0xff]
        %v502 = vld [vmem:[%s387 + $0x2b0] sm:$0xff]
        %v503 = vld [vmem:[%s387 + $0x2b8] sm:$0xff]
        %v504 = vld [vmem:[%s387 + $0x2c0] sm:$0xff]
        %v505 = vld [vmem:[%s387 + $0x2c8] sm:$0xff]
        %v506 = vld [vmem:[%s387 + $0x2d0] sm:$0xff]
        %v507 = vld [vmem:[%s387 + $0x2d8] sm:$0xff]
        %v508 = vld [vmem:[%s387 + $0x2e0] sm:$0xff]
        %v509 = vld [vmem:[%s387 + $0x2e8] sm:$0xff]
        %v510 = vld [vmem:[%s387 + $0x2f0] sm:$0xff]
        %v511 = vld [vmem:[%s387 + $0x2f8] sm:$0xff]
        %v512 = vld [vmem:[%s387 + $0x300] sm:$0xff]
        %v513 = vld [vmem:[%s387 + $0x308] sm:$0xff]
        %v514 = vld [vmem:[%s387 + $0x310] sm:$0xff]
        %v515 = vld [vmem:[%s387 + $0x318] sm:$0xff]
        %v516 = vld [vmem:[%s387 + $0x320] sm:$0xff]
        %v517 = vld [vmem:[%s387 + $0x328] sm:$0xff]
        %v518 = vld [vmem:[%s387 + $0x330] sm:$0xff]
        %v519 = vld [vmem:[%s387 + $0x338] sm:$0xff]
        %v520 = vld [vmem:[%s387 + $0x340] sm:$0xff]
        %v521 = vld [vmem:[%s387 + $0x348] sm:$0x1f]
        %v522 = vld [vmem:[%s387 + $0x350] sm:$0x1f]
        %v523 = vld [vmem:[%s387 + $0x358] sm:$0x1f]
        %v524 = vld [vmem:[%s387 + $0x360] sm:$0x1f]
        %v525 = vld [vmem:[%s387 + $0x368] sm:$0x1f]
        %v526 = vld [vmem:[%s387 + $0x370] sm:$0x1f]
        %v527 = vld [vmem:[%s387 + $0x378] sm:$0x1f]
        %v528 = vld [vmem:[%s2] sm:$0xff]
        %530 = vset.pattern.permute.xlu0 0
        %531 = vperm.xlu0 %530, %v528
        %v532 = vpop.permute.xlu0 %531
        %vm534 = vcmask 1022976
        %v536 = vsel %vm534, %v415, 0
        %vm538 = vcmask 1044480
        %v540 = vsel %vm538, %v521, 0
        %v543 = vsel %vm538, %v522, 0
        %v546 = vsel %vm538, %v523, 0
        %v549 = vsel %vm538, %v524, 0
        %v552 = vsel %vm538, %v525, 0
        %v555 = vsel %vm538, %v526, 0
        %v558 = vsel %vm538, %v527, 0
        %560 = vmatpush.msra.mxu0 %v540
        %561 = vmatpush.msra.mxu0 %v514
        %562 = vmatpush.msra.mxu0 %v507
        %563 = vmatpush.msra.mxu0 %v500
        %564 = vmatpush.msra.mxu0 %v493
        %565 = vmatpush.msra.mxu0 %v486
        %566 = vmatpush.msra.mxu0 %v479
        %567 = vmatpush.msra.mxu0 %v472
        %568 = vmatpush.msra.mxu0 %v465
        %569 = vmatpush.msra.mxu0 %v458
        %570 = vmatpush.msra.mxu0 %v451
        %571 = vmatpush.msra.mxu0 %v444
        %572 = vmatpush.msra.mxu0 %v437
        %573 = vmatpush.msra.mxu0 %v430
        %574 = vmatpush.msra.mxu0 %v423
        %575 = vmatpush.msra.mxu0 %v416
        %576 = vmatmul.f32.gmra.mxu0 %v536
        %v577 = vpop.f32.mrf.mxu0
        %v578 = vadd.f32 %v532, %v577
        %579 = vdwg.mxu0
        %580 = vmatpush.msra.mxu0 %v543
        %581 = vmatpush.msra.mxu0 %v515
        %582 = vmatpush.msra.mxu0 %v508
        %583 = vmatpush.msra.mxu0 %v501
        %584 = vmatpush.msra.mxu0 %v494
        %585 = vmatpush.msra.mxu0 %v487
        %586 = vmatpush.msra.mxu0 %v480
        %587 = vmatpush.msra.mxu0 %v473
        %588 = vmatpush.msra.mxu0 %v466
        %589 = vmatpush.msra.mxu0 %v459
        %590 = vmatpush.msra.mxu0 %v452
        %591 = vmatpush.msra.mxu0 %v445
        %592 = vmatpush.msra.mxu0 %v438
        %593 = vmatpush.msra.mxu0 %v431
        %594 = vmatpush.msra.mxu0 %v424
        %595 = vmatpush.msra.mxu0 %v417
        %596 = vmatmul.f32.gmra.mxu0 %v536
        %v597 = vpop.f32.mrf.mxu0
        %v598 = vadd.f32 %v532, %v597
        %599 = vdwg.mxu0
        %600 = vmatpush.msra.mxu0 %v546
        %601 = vmatpush.msra.mxu0 %v516
        %602 = vmatpush.msra.mxu0 %v509
        %603 = vmatpush.msra.mxu0 %v502
        %604 = vmatpush.msra.mxu0 %v495
        %605 = vmatpush.msra.mxu0 %v488
        %606 = vmatpush.msra.mxu0 %v481
        %607 = vmatpush.msra.mxu0 %v474
        %608 = vmatpush.msra.mxu0 %v467
        %609 = vmatpush.msra.mxu0 %v460
        %610 = vmatpush.msra.mxu0 %v453
        %611 = vmatpush.msra.mxu0 %v446
        %612 = vmatpush.msra.mxu0 %v439
        %613 = vmatpush.msra.mxu0 %v432
        %614 = vmatpush.msra.mxu0 %v425
        %615 = vmatpush.msra.mxu0 %v418
        %616 = vmatmul.f32.gmra.mxu0 %v536
        %v617 = vpop.f32.mrf.mxu0
        %v618 = vadd.f32 %v532, %v617
        %619 = vdwg.mxu0
        %620 = vmatpush.msra.mxu0 %v549
        %621 = vmatpush.msra.mxu0 %v517
        %622 = vmatpush.msra.mxu0 %v510
        %623 = vmatpush.msra.mxu0 %v503
        %624 = vmatpush.msra.mxu0 %v496
        %625 = vmatpush.msra.mxu0 %v489
        %626 = vmatpush.msra.mxu0 %v482
        %627 = vmatpush.msra.mxu0 %v475
        %628 = vmatpush.msra.mxu0 %v468
        %629 = vmatpush.msra.mxu0 %v461
        %630 = vmatpush.msra.mxu0 %v454
        %631 = vmatpush.msra.mxu0 %v447
        %632 = vmatpush.msra.mxu0 %v440
        %633 = vmatpush.msra.mxu0 %v433
        %634 = vmatpush.msra.mxu0 %v426
        %635 = vmatpush.msra.mxu0 %v419
        %636 = vmatmul.f32.gmra.mxu0 %v536
        %v637 = vpop.f32.mrf.mxu0
        %v638 = vadd.f32 %v532, %v637
        %639 = vdwg.mxu0
        %640 = vmatpush.msra.mxu0 %v552
        %641 = vmatpush.msra.mxu0 %v518
        %642 = vmatpush.msra.mxu0 %v511
        %643 = vmatpush.msra.mxu0 %v504
        %644 = vmatpush.msra.mxu0 %v497
        %645 = vmatpush.msra.mxu0 %v490
        %646 = vmatpush.msra.mxu0 %v483
        %647 = vmatpush.msra.mxu0 %v476
        %648 = vmatpush.msra.mxu0 %v469
        %649 = vmatpush.msra.mxu0 %v462
        %650 = vmatpush.msra.mxu0 %v455
        %651 = vmatpush.msra.mxu0 %v448
        %652 = vmatpush.msra.mxu0 %v441
        %653 = vmatpush.msra.mxu0 %v434
        %654 = vmatpush.msra.mxu0 %v427
        %655 = vmatpush.msra.mxu0 %v420
        %656 = vmatmul.f32.gmra.mxu0 %v536
        %v657 = vpop.f32.mrf.mxu0
        %v658 = vadd.f32 %v532, %v657
        %659 = vdwg.mxu0
        %660 = vmatpush.msra.mxu0 %v555
        %661 = vmatpush.msra.mxu0 %v519
        %662 = vmatpush.msra.mxu0 %v512
        %663 = vmatpush.msra.mxu0 %v505
        %664 = vmatpush.msra.mxu0 %v498
        %665 = vmatpush.msra.mxu0 %v491
        %666 = vmatpush.msra.mxu0 %v484
        %667 = vmatpush.msra.mxu0 %v477
        %668 = vmatpush.msra.mxu0 %v470
        %669 = vmatpush.msra.mxu0 %v463
        %670 = vmatpush.msra.mxu0 %v456
        %671 = vmatpush.msra.mxu0 %v449
        %672 = vmatpush.msra.mxu0 %v442
        %673 = vmatpush.msra.mxu0 %v435
        %674 = vmatpush.msra.mxu0 %v428
        %675 = vmatpush.msra.mxu0 %v421
        %676 = vmatmul.f32.gmra.mxu0 %v536
        %v677 = vpop.f32.mrf.mxu0
        %v678 = vadd.f32 %v532, %v677
        %679 = vdwg.mxu0
        %680 = vmatpush.msra.mxu0 %v558
        %681 = vmatpush.msra.mxu0 %v520
        %682 = vmatpush.msra.mxu0 %v513
        %683 = vmatpush.msra.mxu0 %v506
        %684 = vmatpush.msra.mxu0 %v499
        %685 = vmatpush.msra.mxu0 %v492
        %686 = vmatpush.msra.mxu0 %v485
        %687 = vmatpush.msra.mxu0 %v478
        %688 = vmatpush.msra.mxu0 %v471
        %689 = vmatpush.msra.mxu0 %v464
        %690 = vmatpush.msra.mxu0 %v457
        %691 = vmatpush.msra.mxu0 %v450
        %692 = vmatpush.msra.mxu0 %v443
        %693 = vmatpush.msra.mxu0 %v436
        %694 = vmatpush.msra.mxu0 %v429
        %695 = vmatpush.msra.mxu0 %v422
        %696 = vmatmul.f32.gmra.mxu0 %v536
        %v697 = vpop.f32.mrf.mxu0
        %v698 = vadd.f32 %v532, %v697
        %699 = vdwg.mxu0
        %vm700 = vcmp.ge.f32.partialorder %v578, 0.0
        %vm701 = vcmp.ge.f32.partialorder %v598, 0.0
        %vm702 = vcmp.ge.f32.partialorder %v618, 0.0
        %vm703 = vcmp.ge.f32.partialorder %v638, 0.0
        %vm704 = vcmp.ge.f32.partialorder %v658, 0.0
        %vm705 = vcmp.ge.f32.partialorder %v678, 0.0
        %vm706 = vcmp.ge.f32.partialorder %v698, 0.0
        %v707 = vmul.f32 %v578, 0.01
        %v708 = vmul.f32 %v598, 0.01
        %v709 = vmul.f32 %v618, 0.01
        %v710 = vmul.f32 %v638, 0.01
        %v711 = vmul.f32 %v658, 0.01
        %v712 = vmul.f32 %v678, 0.01
        %v713 = vmul.f32 %v698, 0.01
        %v714 = vsel %vm700, %v578, %v707
        %v715 = vsel %vm701, %v598, %v708
        %v716 = vsel %vm702, %v618, %v709
        %v717 = vsel %vm703, %v638, %v710
        %v718 = vsel %vm704, %v658, %v711
        %v719 = vsel %vm705, %v678, %v712
        %v720 = vsel %vm706, %v698, %v713
        %721 = vst [vmem:[%s413] sm:$0xff] %v714
        %722 = vst [vmem:[%s413 + $0x8] sm:$0xff] %v715
        %723 = vst [vmem:[%s413 + $0x10] sm:$0xff] %v716
        %724 = vst [vmem:[%s413 + $0x18] sm:$0xff] %v717
        %725 = vst [vmem:[%s413 + $0x20] sm:$0xff] %v718
        %726 = vst [vmem:[%s413 + $0x28] sm:$0xff] %v719
        %727 = vst [vmem:[%s413 + $0x30] sm:$0xff] %v720
        %s728 = smul.u32 7, %s14
        %p729 = scmp.lt.s32.totalorder %s728, 48
        %s730 = scalar_select %p729, %s728, 48
        %s731 = smul.addr %s730, 8
        %s732 = scalar_lea.vmem %s3, %s731
        // Predicated region
        $region56: #{convnet_forward.5} parent=50 // pred_check
          %p733 = pneg %p100
        $region57: #{convnet_forward.5} parent=50 // pred_check_branch
          %735 = sbr.rel (%p733) target = $region59
        $region58: #{convnet_forward.5} parent=50 // pred_region
          %s736 = smul.u32 7, %s14
        $region59: #{convnet_forward.5} parent=50 // pred_fallthru
          _
      $region51: #{convnet_forward.5} parent=5 // pred_fallthru
        _
      %p737 = scmp.le.s32.totalorder 2, %s9
      // Predicated region
      $region60: #{convnet_forward.5} parent=5 // pred_check
        %p738 = pneg %p737
      $region61: #{convnet_forward.5} parent=5 // pred_check_branch
        %740 = sbr.rel (%p738) target = $region63
      $region62: #{convnet_forward.5} parent=5 // pred_region
        %s741 = ssub.s32 %s9, 2
        // Predicated region
        $region64: #{convnet_forward.5} parent=62 // pred_check
          %p742 = pneg %p106
        $region65: #{convnet_forward.5} parent=62 // pred_check_branch
          %744 = sbr.rel (%p742) target = $region67
        $region66: #{convnet_forward.5} parent=62 // pred_region
          %s745 = smul.u32 7, %s15
          %p746 = scmp.lt.s32.totalorder %s745, 48
          %s747 = scalar_select %p746, %s745, 48
          %s748 = smul.addr %s747, 8
          %s749 = scalar_lea.vmem %s3, %s748
        $region67: #{convnet_forward.5} parent=62 // pred_fallthru
          _
      $region63: #{convnet_forward.5} parent=5 // pred_fallthru
        _
    $region6: #{convnet_forward.5} parent=1 // loop_footer
      %s13 = sadd.s32 1, %s9
    $region7: #{convnet_forward.5} parent=1 // loop_footer_branch
      %8 = sbr.rel target = $region3
    $region8: #{convnet_forward.5} parent=1 // loop_exit
      _

// kernel: convnet_forward.6
$region0: #{convnet_forward.6}
  #allocation0 [shape = 'u32[]', space=smem, size = 0x4, offset = 0x4, fixed_abs, tag = 'smem constant byte address 0x4 - core index']
  #allocation1 [shape = 'u32[72,128]{1,0:T(1,128)}', space=vmem, size = 0x9000, scoped, tag = 'internal scratch']
  %s0 = inlined_call_operand.vmem [shape: f32[8,75], index: 0, kind: input, shape index: {}]
  %s1 = inlined_call_operand.vmem [shape: f32[75,768], index: 1, kind: input, shape index: {}]
  %s2 = inlined_call_operand.vmem [shape: f32[8,1], index: 2, kind: input, shape index: {}]
  %s3 = inlined_call_operand.vmem [shape: f32[8,768], index: 3, kind: output, shape index: {}]
  %s4 = sld [smem:[#allocation0]]
  $region22: #{convnet_forward.6} parent=0
    _
  %s6 = ssub.s32 1, %s4
  %s7 = scalar_select 0, %s6, %s4
  // Predicated region
  $region2: #{convnet_forward.6} parent=0 // pred_check
    _
  $region3: #{convnet_forward.6} parent=0 // pred_check_branch
    %9 = sbr.rel (0) target = $region5
  $region4: #{convnet_forward.6} parent=0 // pred_region
    _
  $region5: #{convnet_forward.6} parent=0 // pred_fallthru
    _
  // Predicated region
  $region6: #{convnet_forward.6} parent=0 // pred_check
    _
  $region7: #{convnet_forward.6} parent=0 // pred_check_branch
    %11 = sbr.rel (0) target = $region9
  $region8: #{convnet_forward.6} parent=0 // pred_region
    _
  $region9: #{convnet_forward.6} parent=0 // pred_fallthru
    _
  // Predicated region
  $region10: #{convnet_forward.6} parent=0 // pred_check
    _
  $region11: #{convnet_forward.6} parent=0 // pred_check_branch
    %13 = sbr.rel (0) target = $region13
  $region12: #{convnet_forward.6} parent=0 // pred_region
    _
  $region13: #{convnet_forward.6} parent=0 // pred_fallthru
    _
  %v14 = vld [vmem:[%s0] sm:$0xff]
  %v15 = vld [vmem:[%s1] sm:$0xff]
  %v16 = vld [vmem:[%s1 + $0x8] sm:$0xff]
  %v17 = vld [vmem:[%s1 + $0x10] sm:$0xff]
  %v18 = vld [vmem:[%s1 + $0x18] sm:$0xff]
  %v19 = vld [vmem:[%s1 + $0x20] sm:$0xff]
  %v20 = vld [vmem:[%s1 + $0x28] sm:$0xff]
  %v21 = vld [vmem:[%s1 + $0x30] sm:$0xff]
  %v22 = vld [vmem:[%s1 + $0x38] sm:$0xff]
  %v23 = vld [vmem:[%s1 + $0x40] sm:$0xff]
  %v24 = vld [vmem:[%s1 + $0x48] sm:$0xff]
  %v25 = vld [vmem:[%s1 + $0x50] sm:$0xff]
  %v26 = vld [vmem:[%s1 + $0x58] sm:$0xff]
  %v27 = vld [vmem:[%s1 + $0x60] sm:$0xff]
  %v28 = vld [vmem:[%s1 + $0x68] sm:$0xff]
  %v29 = vld [vmem:[%s1 + $0x70] sm:$0xff]
  %v30 = vld [vmem:[%s1 + $0x78] sm:$0xff]
  %v31 = vld [vmem:[%s1 + $0x80] sm:$0xff]
  %v32 = vld [vmem:[%s1 + $0x88] sm:$0xff]
  %v33 = vld [vmem:[%s1 + $0x90] sm:$0xff]
  %v34 = vld [vmem:[%s1 + $0x98] sm:$0xff]
  %v35 = vld [vmem:[%s1 + $0xa0] sm:$0xff]
  %v36 = vld [vmem:[%s1 + $0xa8] sm:$0xff]
  %v37 = vld [vmem:[%s1 + $0xb0] sm:$0xff]
  %v38 = vld [vmem:[%s1 + $0xb8] sm:$0xff]
  %v39 = vld [vmem:[%s1 + $0xc0] sm:$0xff]
  %v40 = vld [vmem:[%s1 + $0xc8] sm:$0xff]
  %v41 = vld [vmem:[%s1 + $0xd0] sm:$0xff]
  %v42 = vld [vmem:[%s1 + $0xd8] sm:$0xff]
  %v43 = vld [vmem:[%s1 + $0xe0] sm:$0xff]
  %v44 = vld [vmem:[%s1 + $0xe8] sm:$0xff]
  %v45 = vld [vmem:[%s1 + $0xf0] sm:$0xff]
  %v46 = vld [vmem:[%s1 + $0xf8] sm:$0xff]
  %v47 = vld [vmem:[%s1 + $0x100] sm:$0xff]
  %v48 = vld [vmem:[%s1 + $0x108] sm:$0xff]
  %v49 = vld [vmem:[%s1 + $0x110] sm:$0xff]
  %v50 = vld [vmem:[%s1 + $0x118] sm:$0xff]
  %v51 = vld [vmem:[%s1 + $0x120] sm:$0xff]
  %v52 = vld [vmem:[%s1 + $0x128] sm:$0xff]
  %v53 = vld [vmem:[%s1 + $0x130] sm:$0xff]
  %v54 = vld [vmem:[%s1 + $0x138] sm:$0xff]
  %v55 = vld [vmem:[%s1 + $0x140] sm:$0xff]
  %v56 = vld [vmem:[%s1 + $0x148] sm:$0xff]
  %v57 = vld [vmem:[%s1 + $0x150] sm:$0xff]
  %v58 = vld [vmem:[%s1 + $0x158] sm:$0xff]
  %v59 = vld [vmem:[%s1 + $0x160] sm:$0xff]
  %v60 = vld [vmem:[%s1 + $0x168] sm:$0xff]
  %v61 = vld [vmem:[%s1 + $0x170] sm:$0xff]
  %v62 = vld [vmem:[%s1 + $0x178] sm:$0xff]
  %v63 = vld [vmem:[%s1 + $0x180] sm:$0xff]
  %v64 = vld [vmem:[%s1 + $0x188] sm:$0xff]
  %v65 = vld [vmem:[%s1 + $0x190] sm:$0xff]
  %v66 = vld [vmem:[%s1 + $0x198] sm:$0xff]
  %v67 = vld [vmem:[%s1 + $0x1a0] sm:$0xff]
  %v68 = vld [vmem:[%s1 + $0x1a8] sm:$0xff]
  %v69 = vld [vmem:[%s1 + $0x1b0] sm:$0x7]
  %v70 = vld [vmem:[%s1 + $0x1b8] sm:$0x7]
  %v71 = vld [vmem:[%s1 + $0x1c0] sm:$0x7]
  %v72 = vld [vmem:[%s1 + $0x1c8] sm:$0x7]
  %v73 = vld [vmem:[%s1 + $0x1d0] sm:$0x7]
  %v74 = vld [vmem:[%s1 + $0x1d8] sm:$0x7]
  %v75 = vld [vmem:[%s2] sm:$0xff]
  %77 = vset.pattern.permute.xlu0 0
  %78 = vperm.xlu0 %77, %v75
  %v79 = vpop.permute.xlu0 %78
  %vm81 = vcmask 613376
  %v83 = vsel %vm81, %v14, 0
  %vm85 = vcmask 1042432
  %v87 = vsel %vm85, %v69, 0
  %v90 = vsel %vm85, %v70, 0
  %v93 = vsel %vm85, %v71, 0
  %v96 = vsel %vm85, %v72, 0
  %v99 = vsel %vm85, %v73, 0
  %v102 = vsel %vm85, %v74, 0
  %104 = vmatpush.msra.mxu0 0.0
  %105 = vmatpush.msra.mxu0 0.0
  %106 = vmatpush.msra.mxu0 0.0
  %107 = vmatpush.msra.mxu0 0.0
  %108 = vmatpush.msra.mxu0 0.0
  %109 = vmatpush.msra.mxu0 0.0
  %110 = vmatpush.msra.mxu0 %v87
  %111 = vmatpush.msra.mxu0 %v63
  %112 = vmatpush.msra.mxu0 %v57
  %113 = vmatpush.msra.mxu0 %v51
  %114 = vmatpush.msra.mxu0 %v45
  %115 = vmatpush.msra.mxu0 %v39
  %116 = vmatpush.msra.mxu0 %v33
  %117 = vmatpush.msra.mxu0 %v27
  %118 = vmatpush.msra.mxu0 %v21
  %119 = vmatpush.msra.mxu0 %v15
  %120 = vmatmul.f32.gmra.mxu0 %v83
  %v121 = vpop.f32.mrf.mxu0
  %v122 = vadd.f32 %v79, %v121
  %123 = vdwg.mxu0
  %124 = vmatpush.msra.mxu0 0.0
  %125 = vmatpush.msra.mxu0 0.0
  %126 = vmatpush.msra.mxu0 0.0
  %127 = vmatpush.msra.mxu0 0.0
  %128 = vmatpush.msra.mxu0 0.0
  %129 = vmatpush.msra.mxu0 0.0
  %130 = vmatpush.msra.mxu0 %v90
  %131 = vmatpush.msra.mxu0 %v64
  %132 = vmatpush.msra.mxu0 %v58
  %133 = vmatpush.msra.mxu0 %v52
  %134 = vmatpush.msra.mxu0 %v46
  %135 = vmatpush.msra.mxu0 %v40
  %136 = vmatpush.msra.mxu0 %v34
  %137 = vmatpush.msra.mxu0 %v28
  %138 = vmatpush.msra.mxu0 %v22
  %139 = vmatpush.msra.mxu0 %v16
  %140 = vmatmul.f32.gmra.mxu0 %v83
  %v141 = vpop.f32.mrf.mxu0
  %v142 = vadd.f32 %v79, %v141
  %143 = vdwg.mxu0
  %144 = vmatpush.msra.mxu0 0.0
  %145 = vmatpush.msra.mxu0 0.0
  %146 = vmatpush.msra.mxu0 0.0
  %147 = vmatpush.msra.mxu0 0.0
  %148 = vmatpush.msra.mxu0 0.0
  %149 = vmatpush.msra.mxu0 0.0
  %150 = vmatpush.msra.mxu0 %v93
  %151 = vmatpush.msra.mxu0 %v65
  %152 = vmatpush.msra.mxu0 %v59
  %153 = vmatpush.msra.mxu0 %v53
  %154 = vmatpush.msra.mxu0 %v47
  %155 = vmatpush.msra.mxu0 %v41
  %156 = vmatpush.msra.mxu0 %v35
  %157 = vmatpush.msra.mxu0 %v29
  %158 = vmatpush.msra.mxu0 %v23
  %159 = vmatpush.msra.mxu0 %v17
  %160 = vmatmul.f32.gmra.mxu0 %v83
  %v161 = vpop.f32.mrf.mxu0
  %v162 = vadd.f32 %v79, %v161
  %163 = vdwg.mxu0
  %164 = vmatpush.msra.mxu0 0.0
  %165 = vmatpush.msra.mxu0 0.0
  %166 = vmatpush.msra.mxu0 0.0
  %167 = vmatpush.msra.mxu0 0.0
  %168 = vmatpush.msra.mxu0 0.0
  %169 = vmatpush.msra.mxu0 0.0
  %170 = vmatpush.msra.mxu0 %v96
  %171 = vmatpush.msra.mxu0 %v66
  %172 = vmatpush.msra.mxu0 %v60
  %173 = vmatpush.msra.mxu0 %v54
  %174 = vmatpush.msra.mxu0 %v48
  %175 = vmatpush.msra.mxu0 %v42
  %176 = vmatpush.msra.mxu0 %v36
  %177 = vmatpush.msra.mxu0 %v30
  %178 = vmatpush.msra.mxu0 %v24
  %179 = vmatpush.msra.mxu0 %v18
  %180 = vmatmul.f32.gmra.mxu0 %v83
  %v181 = vpop.f32.mrf.mxu0
  %v182 = vadd.f32 %v79, %v181
  %183 = vdwg.mxu0
  %184 = vmatpush.msra.mxu0 0.0
  %185 = vmatpush.msra.mxu0 0.0
  %186 = vmatpush.msra.mxu0 0.0
  %187 = vmatpush.msra.mxu0 0.0
  %188 = vmatpush.msra.mxu0 0.0
  %189 = vmatpush.msra.mxu0 0.0
  %190 = vmatpush.msra.mxu0 %v99
  %191 = vmatpush.msra.mxu0 %v67
  %192 = vmatpush.msra.mxu0 %v61
  %193 = vmatpush.msra.mxu0 %v55
  %194 = vmatpush.msra.mxu0 %v49
  %195 = vmatpush.msra.mxu0 %v43
  %196 = vmatpush.msra.mxu0 %v37
  %197 = vmatpush.msra.mxu0 %v31
  %198 = vmatpush.msra.mxu0 %v25
  %199 = vmatpush.msra.mxu0 %v19
  %200 = vmatmul.f32.gmra.mxu0 %v83
  %v201 = vpop.f32.mrf.mxu0
  %v202 = vadd.f32 %v79, %v201
  %203 = vdwg.mxu0
  %204 = vmatpush.msra.mxu0 0.0
  %205 = vmatpush.msra.mxu0 0.0
  %206 = vmatpush.msra.mxu0 0.0
  %207 = vmatpush.msra.mxu0 0.0
  %208 = vmatpush.msra.mxu0 0.0
  %209 = vmatpush.msra.mxu0 0.0
  %210 = vmatpush.msra.mxu0 %v102
  %211 = vmatpush.msra.mxu0 %v68
  %212 = vmatpush.msra.mxu0 %v62
  %213 = vmatpush.msra.mxu0 %v56
  %214 = vmatpush.msra.mxu0 %v50
  %215 = vmatpush.msra.mxu0 %v44
  %216 = vmatpush.msra.mxu0 %v38
  %217 = vmatpush.msra.mxu0 %v32
  %218 = vmatpush.msra.mxu0 %v26
  %219 = vmatpush.msra.mxu0 %v20
  %220 = vmatmul.f32.gmra.mxu0 %v83
  %v221 = vpop.f32.mrf.mxu0
  %v222 = vadd.f32 %v79, %v221
  %223 = vdwg.mxu0
  %vm224 = vcmp.ge.f32.partialorder %v122, 0.0
  %vm225 = vcmp.ge.f32.partialorder %v142, 0.0
  %vm226 = vcmp.ge.f32.partialorder %v162, 0.0
  %vm227 = vcmp.ge.f32.partialorder %v182, 0.0
  %vm228 = vcmp.ge.f32.partialorder %v202, 0.0
  %vm229 = vcmp.ge.f32.partialorder %v222, 0.0
  %v230 = vmul.f32 %v122, 0.01
  %v231 = vmul.f32 %v142, 0.01
  %v232 = vmul.f32 %v162, 0.01
  %v233 = vmul.f32 %v182, 0.01
  %v234 = vmul.f32 %v202, 0.01
  %v235 = vmul.f32 %v222, 0.01
  %v236 = vsel %vm224, %v122, %v230
  %v237 = vsel %vm225, %v142, %v231
  %v238 = vsel %vm226, %v162, %v232
  %v239 = vsel %vm227, %v182, %v233
  %v240 = vsel %vm228, %v202, %v234
  %v241 = vsel %vm229, %v222, %v235
  %242 = vst [vmem:[%s3] sm:$0xff] %v236
  %243 = vst [vmem:[%s3 + $0x8] sm:$0xff] %v237
  %244 = vst [vmem:[%s3 + $0x10] sm:$0xff] %v238
  %245 = vst [vmem:[%s3 + $0x18] sm:$0xff] %v239
  %246 = vst [vmem:[%s3 + $0x20] sm:$0xff] %v240
  %247 = vst [vmem:[%s3 + $0x28] sm:$0xff] %v241
  // Predicated region
  $region14: #{convnet_forward.6} parent=0 // pred_check
    _
  $region15: #{convnet_forward.6} parent=0 // pred_check_branch
    %249 = sbr.rel (0) target = $region17
  $region16: #{convnet_forward.6} parent=0 // pred_region
    _
  $region17: #{convnet_forward.6} parent=0 // pred_fallthru
    _
  // Predicated region
  $region18: #{convnet_forward.6} parent=0 // pred_check
    _
  $region19: #{convnet_forward.6} parent=0 // pred_check_branch
    %251 = sbr.rel (0) target = $region21
  $region20: #{convnet_forward.6} parent=0 // pred_region
    _
  $region21: #{convnet_forward.6} parent=0 // pred_fallthru
    _

// kernel: convnet_forward.7
$region0: #{convnet_forward.7}
  #allocation0 [shape = 'u32[]', space=smem, size = 0x4, offset = 0x4, fixed_abs, tag = 'smem constant byte address 0x4 - core index']
  #allocation1 [shape = 'u32[72,128]{1,0:T(1,128)}', space=vmem, size = 0x9000, scoped, tag = 'internal scratch']
  %s0 = inlined_call_operand.vmem [shape: f32[8,966], index: 0, kind: input, shape index: {}]
  %s1 = inlined_call_operand.vmem [shape: f32[966,128], index: 1, kind: input, shape index: {}]
  %s2 = inlined_call_operand.vmem [shape: f32[1,128], index: 2, kind: input, shape index: {}]
  %s3 = inlined_call_operand.vmem [shape: f32[128,128], index: 3, kind: input, shape index: {}]
  %s4 = inlined_call_operand.vmem [shape: f32[1,128], index: 4, kind: input, shape index: {}]
  %s5 = inlined_call_operand.vmem [shape: f32[8,128], index: 5, kind: output, shape index: {}]
  %s6 = sld [smem:[#allocation0]]
  $region30: #{convnet_forward.7} parent=0
    _
  %s8 = ssub.s32 1, %s6
  %s9 = scalar_select 0, %s8, %s6
  // Predicated region
  $region2: #{convnet_forward.7} parent=0 // pred_check
    _
  $region3: #{convnet_forward.7} parent=0 // pred_check_branch
    %11 = sbr.rel (0) target = $region5
  $region4: #{convnet_forward.7} parent=0 // pred_region
    _
  $region5: #{convnet_forward.7} parent=0 // pred_fallthru
    _
  // Predicated region
  $region6: #{convnet_forward.7} parent=0 // pred_check
    _
  $region7: #{convnet_forward.7} parent=0 // pred_check_branch
    %13 = sbr.rel (0) target = $region9
  $region8: #{convnet_forward.7} parent=0 // pred_region
    _
  $region9: #{convnet_forward.7} parent=0 // pred_fallthru
    _
  // Predicated region
  $region10: #{convnet_forward.7} parent=0 // pred_check
    _
  $region11: #{convnet_forward.7} parent=0 // pred_check_branch
    %15 = sbr.rel (0) target = $region13
  $region12: #{convnet_forward.7} parent=0 // pred_region
    _
  $region13: #{convnet_forward.7} parent=0 // pred_fallthru
    _
  // Predicated region
  $region14: #{convnet_forward.7} parent=0 // pred_check
    _
  $region15: #{convnet_forward.7} parent=0 // pred_check_branch
    %17 = sbr.rel (0) target = $region17
  $region16: #{convnet_forward.7} parent=0 // pred_region
    _
  $region17: #{convnet_forward.7} parent=0 // pred_fallthru
    _
  // Predicated region
  $region18: #{convnet_forward.7} parent=0 // pred_check
    _
  $region19: #{convnet_forward.7} parent=0 // pred_check_branch
    %19 = sbr.rel (0) target = $region21
  $region20: #{convnet_forward.7} parent=0 // pred_region
    _
  $region21: #{convnet_forward.7} parent=0 // pred_fallthru
    _
  %v20 = vld [vmem:[%s0] sm:$0xff]
  %v21 = vld [vmem:[%s0 + $0x8] sm:$0xff]
  %v22 = vld [vmem:[%s0 + $0x10] sm:$0xff]
  %v23 = vld [vmem:[%s0 + $0x18] sm:$0xff]
  %v24 = vld [vmem:[%s0 + $0x20] sm:$0xff]
  %v25 = vld [vmem:[%s0 + $0x28] sm:$0xff]
  %v26 = vld [vmem:[%s0 + $0x30] sm:$0xff]
  %v27 = vld [vmem:[%s0 + $0x38] sm:$0xff]
  %v28 = vld [vmem:[%s1] sm:$0xff]
  %v29 = vld [vmem:[%s1 + $0x8] sm:$0xff]
  %v30 = vld [vmem:[%s1 + $0x10] sm:$0xff]
  %v31 = vld [vmem:[%s1 + $0x18] sm:$0xff]
  %v32 = vld [vmem:[%s1 + $0x20] sm:$0xff]
  %v33 = vld [vmem:[%s1 + $0x28] sm:$0xff]
  %v34 = vld [vmem:[%s1 + $0x30] sm:$0xff]
  %v35 = vld [vmem:[%s1 + $0x38] sm:$0xff]
  %v36 = vld [vmem:[%s1 + $0x40] sm:$0xff]
  %v37 = vld [vmem:[%s1 + $0x48] sm:$0xff]
  %v38 = vld [vmem:[%s1 + $0x50] sm:$0xff]
  %v39 = vld [vmem:[%s1 + $0x58] sm:$0xff]
  %v40 = vld [vmem:[%s1 + $0x60] sm:$0xff]
  %v41 = vld [vmem:[%s1 + $0x68] sm:$0xff]
  %v42 = vld [vmem:[%s1 + $0x70] sm:$0xff]
  %v43 = vld [vmem:[%s1 + $0x78] sm:$0xff]
  %v44 = vld [vmem:[%s1 + $0x80] sm:$0xff]
  %v45 = vld [vmem:[%s1 + $0x88] sm:$0xff]
  %v46 = vld [vmem:[%s1 + $0x90] sm:$0xff]
  %v47 = vld [vmem:[%s1 + $0x98] sm:$0xff]
  %v48 = vld [vmem:[%s1 + $0xa0] sm:$0xff]
  %v49 = vld [vmem:[%s1 + $0xa8] sm:$0xff]
  %v50 = vld [vmem:[%s1 + $0xb0] sm:$0xff]
  %v51 = vld [vmem:[%s1 + $0xb8] sm:$0xff]
  %v52 = vld [vmem:[%s1 + $0xc0] sm:$0xff]
  %v53 = vld [vmem:[%s1 + $0xc8] sm:$0xff]
  %v54 = vld [vmem:[%s1 + $0xd0] sm:$0xff]
  %v55 = vld [vmem:[%s1 + $0xd8] sm:$0xff]
  %v56 = vld [vmem:[%s1 + $0xe0] sm:$0xff]
  %v57 = vld [vmem:[%s1 + $0xe8] sm:$0xff]
  %v58 = vld [vmem:[%s1 + $0xf0] sm:$0xff]
  %v59 = vld [vmem:[%s1 + $0xf8] sm:$0xff]
  %v60 = vld [vmem:[%s1 + $0x100] sm:$0xff]
  %v61 = vld [vmem:[%s1 + $0x108] sm:$0xff]
  %v62 = vld [vmem:[%s1 + $0x110] sm:$0xff]
  %v63 = vld [vmem:[%s1 + $0x118] sm:$0xff]
  %v64 = vld [vmem:[%s1 + $0x120] sm:$0xff]
  %v65 = vld [vmem:[%s1 + $0x128] sm:$0xff]
  %v66 = vld [vmem:[%s1 + $0x130] sm:$0xff]
  %v67 = vld [vmem:[%s1 + $0x138] sm:$0xff]
  %v68 = vld [vmem:[%s1 + $0x140] sm:$0xff]
  %v69 = vld [vmem:[%s1 + $0x148] sm:$0xff]
  %v70 = vld [vmem:[%s1 + $0x150] sm:$0xff]
  %v71 = vld [vmem:[%s1 + $0x158] sm:$0xff]
  %v72 = vld [vmem:[%s1 + $0x160] sm:$0xff]
  %v73 = vld [vmem:[%s1 + $0x168] sm:$0xff]
  %v74 = vld [vmem:[%s1 + $0x170] sm:$0xff]
  %v75 = vld [vmem:[%s1 + $0x178] sm:$0xff]
  %v76 = vld [vmem:[%s1 + $0x180] sm:$0xff]
  %v77 = vld [vmem:[%s1 + $0x188] sm:$0xff]
  %v78 = vld [vmem:[%s1 + $0x190] sm:$0xff]
  %v79 = vld [vmem:[%s1 + $0x198] sm:$0xff]
  %v80 = vld [vmem:[%s1 + $0x1a0] sm:$0xff]
  %v81 = vld [vmem:[%s1 + $0x1a8] sm:$0xff]
  %v82 = vld [vmem:[%s1 + $0x1b0] sm:$0xff]
  %v83 = vld [vmem:[%s1 + $0x1b8] sm:$0xff]
  %v84 = vld [vmem:[%s1 + $0x1c0] sm:$0xff]
  %v85 = vld [vmem:[%s1 + $0x1c8] sm:$0xff]
  %v86 = vld [vmem:[%s1 + $0x1d0] sm:$0xff]
  %v87 = vld [vmem:[%s1 + $0x1d8] sm:$0xff]
  %v88 = vld [vmem:[%s1 + $0x1e0] sm:$0xff]
  %v89 = vld [vmem:[%s1 + $0x1e8] sm:$0xff]
  %v90 = vld [vmem:[%s1 + $0x1f0] sm:$0xff]
  %v91 = vld [vmem:[%s1 + $0x1f8] sm:$0xff]
  %v92 = vld [vmem:[%s1 + $0x200] sm:$0xff]
  %v93 = vld [vmem:[%s1 + $0x208] sm:$0xff]
  %v94 = vld [vmem:[%s1 + $0x210] sm:$0xff]
  %v95 = vld [vmem:[%s1 + $0x218] sm:$0xff]
  %v96 = vld [vmem:[%s1 + $0x220] sm:$0xff]
  %v97 = vld [vmem:[%s1 + $0x228] sm:$0xff]
  %v98 = vld [vmem:[%s1 + $0x230] sm:$0xff]
  %v99 = vld [vmem:[%s1 + $0x238] sm:$0xff]
  %v100 = vld [vmem:[%s1 + $0x240] sm:$0xff]
  %v101 = vld [vmem:[%s1 + $0x248] sm:$0xff]
  %v102 = vld [vmem:[%s1 + $0x250] sm:$0xff]
  %v103 = vld [vmem:[%s1 + $0x258] sm:$0xff]
  %v104 = vld [vmem:[%s1 + $0x260] sm:$0xff]
  %v105 = vld [vmem:[%s1 + $0x268] sm:$0xff]
  %v106 = vld [vmem:[%s1 + $0x270] sm:$0xff]
  %v107 = vld [vmem:[%s1 + $0x278] sm:$0xff]
  %v108 = vld [vmem:[%s1 + $0x280] sm:$0xff]
  %v109 = vld [vmem:[%s1 + $0x288] sm:$0xff]
  %v110 = vld [vmem:[%s1 + $0x290] sm:$0xff]
  %v111 = vld [vmem:[%s1 + $0x298] sm:$0xff]
  %v112 = vld [vmem:[%s1 + $0x2a0] sm:$0xff]
  %v113 = vld [vmem:[%s1 + $0x2a8] sm:$0xff]
  %v114 = vld [vmem:[%s1 + $0x2b0] sm:$0xff]
  %v115 = vld [vmem:[%s1 + $0x2b8] sm:$0xff]
  %v116 = vld [vmem:[%s1 + $0x2c0] sm:$0xff]
  %v117 = vld [vmem:[%s1 + $0x2c8] sm:$0xff]
  %v118 = vld [vmem:[%s1 + $0x2d0] sm:$0xff]
  %v119 = vld [vmem:[%s1 + $0x2d8] sm:$0xff]
  %v120 = vld [vmem:[%s1 + $0x2e0] sm:$0xff]
  %v121 = vld [vmem:[%s1 + $0x2e8] sm:$0xff]
  %v122 = vld [vmem:[%s1 + $0x2f0] sm:$0xff]
  %v123 = vld [vmem:[%s1 + $0x2f8] sm:$0xff]
  %v124 = vld [vmem:[%s1 + $0x300] sm:$0xff]
  %v125 = vld [vmem:[%s1 + $0x308] sm:$0xff]
  %v126 = vld [vmem:[%s1 + $0x310] sm:$0xff]
  %v127 = vld [vmem:[%s1 + $0x318] sm:$0xff]
  %v128 = vld [vmem:[%s1 + $0x320] sm:$0xff]
  %v129 = vld [vmem:[%s1 + $0x328] sm:$0xff]
  %v130 = vld [vmem:[%s1 + $0x330] sm:$0xff]
  %v131 = vld [vmem:[%s1 + $0x338] sm:$0xff]
  %v132 = vld [vmem:[%s1 + $0x340] sm:$0xff]
  %v133 = vld [vmem:[%s1 + $0x348] sm:$0xff]
  %v134 = vld [vmem:[%s1 + $0x350] sm:$0xff]
  %v135 = vld [vmem:[%s1 + $0x358] sm:$0xff]
  %v136 = vld [vmem:[%s1 + $0x360] sm:$0xff]
  %v137 = vld [vmem:[%s1 + $0x368] sm:$0xff]
  %v138 = vld [vmem:[%s1 + $0x370] sm:$0xff]
  %v139 = vld [vmem:[%s1 + $0x378] sm:$0xff]
  %v140 = vld [vmem:[%s1 + $0x380] sm:$0xff]
  %v141 = vld [vmem:[%s1 + $0x388] sm:$0xff]
  %v142 = vld [vmem:[%s1 + $0x390] sm:$0xff]
  %v143 = vld [vmem:[%s1 + $0x398] sm:$0xff]
  %v144 = vld [vmem:[%s1 + $0x3a0] sm:$0xff]
  %v145 = vld [vmem:[%s1 + $0x3a8] sm:$0xff]
  %v146 = vld [vmem:[%s1 + $0x3b0] sm:$0xff]
  %v147 = vld [vmem:[%s1 + $0x3b8] sm:$0xff]
  %v148 = vld [vmem:[%s1 + $0x3c0] sm:$0x3f]
  %v149 = vld [vmem:[%s2] sm:$0x1]
  %v151 = vperm.slane %v149, 0
  %vm153 = vcmask 572416
  %v155 = vsel %vm153, %v27, 0
  %vm157 = vcmask 1045504
  %v159 = vsel %vm157, %v148, 0
  %161 = vmatpush.msra.mxu0 %v43
  %162 = vmatpush.msra.mxu0 %v42
  %163 = vmatpush.msra.mxu0 %v41
  %164 = vmatpush.msra.mxu0 %v40
  %165 = vmatpush.msra.mxu0 %v39
  %166 = vmatpush.msra.mxu0 %v38
  %167 = vmatpush.msra.mxu0 %v37
  %168 = vmatpush.msra.mxu0 %v36
  %169 = vmatpush.msra.mxu0 %v35
  %170 = vmatpush.msra.mxu0 %v34
  %171 = vmatpush.msra.mxu0 %v33
  %172 = vmatpush.msra.mxu0 %v32
  %173 = vmatpush.msra.mxu0 %v31
  %174 = vmatpush.msra.mxu0 %v30
  %175 = vmatpush.msra.mxu0 %v29
  %176 = vmatpush.msra.mxu0 %v28
  %177 = vmatmul.f32.gmra.mxu0 %v20
  %v178 = vpop.f32.mrf.mxu0
  %v179 = vadd.f32 %v151, %v178
  %180 = vdwg.mxu0
  %181 = vmatpush.msra.mxu0 %v59
  %182 = vmatpush.msra.mxu0 %v58
  %183 = vmatpush.msra.mxu0 %v57
  %184 = vmatpush.msra.mxu0 %v56
  %185 = vmatpush.msra.mxu0 %v55
  %186 = vmatpush.msra.mxu0 %v54
  %187 = vmatpush.msra.mxu0 %v53
  %188 = vmatpush.msra.mxu0 %v52
  %189 = vmatpush.msra.mxu0 %v51
  %190 = vmatpush.msra.mxu0 %v50
  %191 = vmatpush.msra.mxu0 %v49
  %192 = vmatpush.msra.mxu0 %v48
  %193 = vmatpush.msra.mxu0 %v47
  %194 = vmatpush.msra.mxu0 %v46
  %195 = vmatpush.msra.mxu0 %v45
  %196 = vmatpush.msra.mxu0 %v44
  %197 = vmatmul.f32.gmra.mxu0 %v21
  %v198 = vpop.f32.mrf.mxu0
  %v199 = vadd.f32 %v179, %v198
  %200 = vdwg.mxu0
  %201 = vmatpush.msra.mxu0 %v75
  %202 = vmatpush.msra.mxu0 %v74
  %203 = vmatpush.msra.mxu0 %v73
  %204 = vmatpush.msra.mxu0 %v72
  %205 = vmatpush.msra.mxu0 %v71
  %206 = vmatpush.msra.mxu0 %v70
  %207 = vmatpush.msra.mxu0 %v69
  %208 = vmatpush.msra.mxu0 %v68
  %209 = vmatpush.msra.mxu0 %v67
  %210 = vmatpush.msra.mxu0 %v66
  %211 = vmatpush.msra.mxu0 %v65
  %212 = vmatpush.msra.mxu0 %v64
  %213 = vmatpush.msra.mxu0 %v63
  %214 = vmatpush.msra.mxu0 %v62
  %215 = vmatpush.msra.mxu0 %v61
  %216 = vmatpush.msra.mxu0 %v60
  %217 = vmatmul.f32.gmra.mxu0 %v22
  %v218 = vpop.f32.mrf.mxu0
  %v219 = vadd.f32 %v199, %v218
  %220 = vdwg.mxu0
  %221 = vmatpush.msra.mxu0 %v91
  %222 = vmatpush.msra.mxu0 %v90
  %223 = vmatpush.msra.mxu0 %v89
  %224 = vmatpush.msra.mxu0 %v88
  %225 = vmatpush.msra.mxu0 %v87
  %226 = vmatpush.msra.mxu0 %v86
  %227 = vmatpush.msra.mxu0 %v85
  %228 = vmatpush.msra.mxu0 %v84
  %229 = vmatpush.msra.mxu0 %v83
  %230 = vmatpush.msra.mxu0 %v82
  %231 = vmatpush.msra.mxu0 %v81
  %232 = vmatpush.msra.mxu0 %v80
  %233 = vmatpush.msra.mxu0 %v79
  %234 = vmatpush.msra.mxu0 %v78
  %235 = vmatpush.msra.mxu0 %v77
  %236 = vmatpush.msra.mxu0 %v76
  %237 = vmatmul.f32.gmra.mxu0 %v23
  %v238 = vpop.f32.mrf.mxu0
  %v239 = vadd.f32 %v219, %v238
  %240 = vdwg.mxu0
  %241 = vmatpush.msra.mxu0 %v107
  %242 = vmatpush.msra.mxu0 %v106
  %243 = vmatpush.msra.mxu0 %v105
  %244 = vmatpush.msra.mxu0 %v104
  %245 = vmatpush.msra.mxu0 %v103
  %246 = vmatpush.msra.mxu0 %v102
  %247 = vmatpush.msra.mxu0 %v101
  %248 = vmatpush.msra.mxu0 %v100
  %249 = vmatpush.msra.mxu0 %v99
  %250 = vmatpush.msra.mxu0 %v98
  %251 = vmatpush.msra.mxu0 %v97
  %252 = vmatpush.msra.mxu0 %v96
  %253 = vmatpush.msra.mxu0 %v95
  %254 = vmatpush.msra.mxu0 %v94
  %255 = vmatpush.msra.mxu0 %v93
  %256 = vmatpush.msra.mxu0 %v92
  %257 = vmatmul.f32.gmra.mxu0 %v24
  %v258 = vpop.f32.mrf.mxu0
  %v259 = vadd.f32 %v239, %v258
  %260 = vdwg.mxu0
  %261 = vmatpush.msra.mxu0 %v123
  %262 = vmatpush.msra.mxu0 %v122
  %263 = vmatpush.msra.mxu0 %v121
  %264 = vmatpush.msra.mxu0 %v120
  %265 = vmatpush.msra.mxu0 %v119
  %266 = vmatpush.msra.mxu0 %v118
  %267 = vmatpush.msra.mxu0 %v117
  %268 = vmatpush.msra.mxu0 %v116
  %269 = vmatpush.msra.mxu0 %v115
  %270 = vmatpush.msra.mxu0 %v114
  %271 = vmatpush.msra.mxu0 %v113
  %272 = vmatpush.msra.mxu0 %v112
  %273 = vmatpush.msra.mxu0 %v111
  %274 = vmatpush.msra.mxu0 %v110
  %275 = vmatpush.msra.mxu0 %v109
  %276 = vmatpush.msra.mxu0 %v108
  %277 = vmatmul.f32.gmra.mxu0 %v25
  %v278 = vpop.f32.mrf.mxu0
  %v279 = vadd.f32 %v259, %v278
  %280 = vdwg.mxu0
  %281 = vmatpush.msra.mxu0 %v139
  %282 = vmatpush.msra.mxu0 %v138
  %283 = vmatpush.msra.mxu0 %v137
  %284 = vmatpush.msra.mxu0 %v136
  %285 = vmatpush.msra.mxu0 %v135
  %286 = vmatpush.msra.mxu0 %v134
  %287 = vmatpush.msra.mxu0 %v133
  %288 = vmatpush.msra.mxu0 %v132
  %289 = vmatpush.msra.mxu0 %v131
  %290 = vmatpush.msra.mxu0 %v130
  %291 = vmatpush.msra.mxu0 %v129
  %292 = vmatpush.msra.mxu0 %v128
  %293 = vmatpush.msra.mxu0 %v127
  %294 = vmatpush.msra.mxu0 %v126
  %295 = vmatpush.msra.mxu0 %v125
  %296 = vmatpush.msra.mxu0 %v124
  %297 = vmatmul.f32.gmra.mxu0 %v26
  %v298 = vpop.f32.mrf.mxu0
  %v299 = vadd.f32 %v279, %v298
  %300 = vdwg.mxu0
  %301 = vmatpush.msra.mxu0 0.0
  %302 = vmatpush.msra.mxu0 0.0
  %303 = vmatpush.msra.mxu0 0.0
  %304 = vmatpush.msra.mxu0 0.0
  %305 = vmatpush.msra.mxu0 0.0
  %306 = vmatpush.msra.mxu0 0.0
  %307 = vmatpush.msra.mxu0 0.0
  %308 = vmatpush.msra.mxu0 %v159
  %309 = vmatpush.msra.mxu0 %v147
  %310 = vmatpush.msra.mxu0 %v146
  %311 = vmatpush.msra.mxu0 %v145
  %312 = vmatpush.msra.mxu0 %v144
  %313 = vmatpush.msra.mxu0 %v143
  %314 = vmatpush.msra.mxu0 %v142
  %315 = vmatpush.msra.mxu0 %v141
  %316 = vmatpush.msra.mxu0 %v140
  %317 = vmatmul.f32.gmra.mxu0 %v155
  %v318 = vpop.f32.mrf.mxu0
  %v319 = vadd.f32 %v299, %v318
  %320 = vdwg.mxu0
  %vm321 = vcmp.ge.f32.partialorder %v319, 0.0
  %v322 = vmul.f32 %v319, 0.01
  %v323 = vsel %vm321, %v319, %v322
  %v324 = vld [vmem:[%s3] sm:$0xff]
  %v325 = vld [vmem:[%s3 + $0x8] sm:$0xff]
  %v326 = vld [vmem:[%s3 + $0x10] sm:$0xff]
  %v327 = vld [vmem:[%s3 + $0x18] sm:$0xff]
  %v328 = vld [vmem:[%s3 + $0x20] sm:$0xff]
  %v329 = vld [vmem:[%s3 + $0x28] sm:$0xff]
  %v330 = vld [vmem:[%s3 + $0x30] sm:$0xff]
  %v331 = vld [vmem:[%s3 + $0x38] sm:$0xff]
  %v332 = vld [vmem:[%s3 + $0x40] sm:$0xff]
  %v333 = vld [vmem:[%s3 + $0x48] sm:$0xff]
  %v334 = vld [vmem:[%s3 + $0x50] sm:$0xff]
  %v335 = vld [vmem:[%s3 + $0x58] sm:$0xff]
  %v336 = vld [vmem:[%s3 + $0x60] sm:$0xff]
  %v337 = vld [vmem:[%s3 + $0x68] sm:$0xff]
  %v338 = vld [vmem:[%s3 + $0x70] sm:$0xff]
  %v339 = vld [vmem:[%s3 + $0x78] sm:$0xff]
  %v340 = vld [vmem:[%s4] sm:$0x1]
  %v342 = vperm.slane %v340, 0
  %344 = vmatpush.msra.mxu0 %v339
  %345 = vmatpush.msra.mxu0 %v338
  %346 = vmatpush.msra.mxu0 %v337
  %347 = vmatpush.msra.mxu0 %v336
  %348 = vmatpush.msra.mxu0 %v335
  %349 = vmatpush.msra.mxu0 %v334
  %350 = vmatpush.msra.mxu0 %v333
  %351 = vmatpush.msra.mxu0 %v332
  %352 = vmatpush.msra.mxu0 %v331
  %353 = vmatpush.msra.mxu0 %v330
  %354 = vmatpush.msra.mxu0 %v329
  %355 = vmatpush.msra.mxu0 %v328
  %356 = vmatpush.msra.mxu0 %v327
  %357 = vmatpush.msra.mxu0 %v326
  %358 = vmatpush.msra.mxu0 %v325
  %359 = vmatpush.msra.mxu0 %v324
  %360 = vmatmul.f32.gmra.mxu0 %v323
  %v361 = vpop.f32.mrf.mxu0
  %v362 = vadd.f32 %v342, %v361
  %363 = vdwg.mxu0
  %364 = vst [vmem:[%s5] sm:$0xff] %v362
  // Predicated region
  $region22: #{convnet_forward.7} parent=0 // pred_check
    _
  $region23: #{convnet_forward.7} parent=0 // pred_check_branch
    %366 = sbr.rel (0) target = $region25
  $region24: #{convnet_forward.7} parent=0 // pred_region
    _
  $region25: #{convnet_forward.7} parent=0 // pred_fallthru
    _
  // Predicated region
  $region26: #{convnet_forward.7} parent=0 // pred_check
    _
  $region27: #{convnet_forward.7} parent=0 // pred_check_branch
    %368 = sbr.rel (0) target = $region29
  $region28: #{convnet_forward.7} parent=0 // pred_region
    _
  $region29: #{convnet_forward.7} parent=0 // pred_fallthru
    _

</llo_original>
